<compile_context>
chip_gen: v7x
topology: tpu7x:2x2x1
jax: 0.10.0
libtpu: 0.0.40
codegen_flags: <defaults>
</compile_context>

<pallas_src>
import functools
import numpy as np
import jax
import jax.numpy as jnp
from jax.experimental import pallas as pl
from jax.experimental.pallas import tpu as pltpu


# ------------------------------ Pallas kernel -------------------------------

def _shift_flat(v, off, n):
    """out[:, i] = v[:, (i + off) mod n] via slice+concat (unambiguous roll)."""
    o = off % n
    if o == 0:
        return v
    return jnp.concatenate([v[:, o:], v[:, :o]], axis=1)


def _decoder_block_kernel(x_ref, skip_ref, u_ref, m_ref,
                          wg_ref, bg_ref, wx_ref, bx_ref, wp_ref, bp_ref,
                          w1_ref, b1_ref, w2_ref, b2_ref, o_ref, *, H2, W2):
    """Fused decoder_block for one batch element (channels-major layout).

    x:    (1, Cg, H*W)    upsample input, flattened spatial
    skip: (1, Cx, H2*W2)  encoder skip,   flattened spatial
    u:    (H*W, H2*W2)    Kronecker bilinear-upsample matrix (align_corners=True)
    m:    (9, H2*W2)      precomputed 3x3 halo validity masks
    wg/wx/wp: (Co, Cin) 1x1-conv weights (BN folded); biases (Co, 1)
    w1/w2:    (Co, 9*Cin) flattened 3x3-conv weights (BN folded); biases (Co, 1)
    o:    (1, Co, H2*W2)
    """
    HW2 = H2 * W2
    x = x_ref[0]                                # (Cg, H*W)  f32
    sk = skip_ref[0]                            # (Cx, HW2)  f32

    # 1) bilinear x2 upsample: one lane-dense matmul.
    up = jnp.dot(x, u_ref[...], preferred_element_type=jnp.float32)   # (Cg, HW2)

    # 2) attention gate: 1x1 convs (+folded BN), ReLU, sigmoid, gate the skip.
    g1 = jnp.dot(wg_ref[...], up, preferred_element_type=jnp.float32) + bg_ref[...]
    x1 = jnp.dot(wx_ref[...], sk, preferred_element_type=jnp.float32) + bx_ref[...]
    a = jnp.maximum(g1 + x1, 0.0)
    p = jnp.dot(wp_ref[...], a, preferred_element_type=jnp.float32) + bp_ref[...]
    att = sk * jax.nn.sigmoid(p)                # inputs * psi   (Cx == Co)
    cat = jnp.concatenate([up, att], axis=0)    # (Cg + Cx, HW2) channel concat

    masks = m_ref[...]                          # (9, HW2) f32 halo masks

    def conv3x3_bn_relu(xin, w_flat_ref, b_ref):
        """3x3 same-conv as ONE matmul on a stacked im2col slab.

        bf16 MXU operands, f32 accumulation; elementwise stays f32.
        """
        taps = []
        for k in range(9):
            dy, dx = k // 3 - 1, k % 3 - 1
            shifted = _shift_flat(xin, dy * W2 + dx, HW2)
            taps.append(shifted * masks[k:k + 1, :])
        im2col = jnp.concatenate(taps, axis=0).astype(jnp.bfloat16)   # (9*Cin, HW2)
        w = w_flat_ref[...].astype(jnp.bfloat16)                      # (Co, 9*Cin)
        acc = jnp.dot(w, im2col, preferred_element_type=jnp.float32)  # (Co, HW2)
        return jnp.maximum(acc + b_ref[...], 0.0)

    # 3) conv_block: (conv3x3 + BN + ReLU) x 2 ; Dropout(None) == Identity.
    y1 = conv3x3_bn_relu(cat, w1_ref, b1_ref)
    y2 = conv3x3_bn_relu(y1, w2_ref, b2_ref)
    o_ref[0] = y2.astype(o_ref.dtype)


def decoder_block_forward(params, inputs, skip, U, masks):
    """inputs: (N, Cg, H, W) NCHW ; skip: (N, Cx, 2H, 2W) NCHW -> (N, Co, 2H, 2W)."""
    N, Cg, H, W = inputs.shape
    _, Cx, H2, W2 = skip.shape
    Co = params['wgT'].shape[0]
    HW, HW2 = H * W, H2 * W2

    # Free contiguous reshapes (no transpose, no extra HBM pass).
    x2 = inputs.reshape(N, Cg, HW)
    s2 = skip.reshape(N, Cx, HW2)

    kernel = functools.partial(_decoder_block_kernel, H2=H2, W2=W2)
    # TODO(synk): for large decoder resolutions, add an H2-row-tile grid axis
    # with a 1-row halo and size tiles / vmem_limit_bytes for v7x's 64 MiB VMEM.
    out = pl.pallas_call(
        kernel,
        out_shape=jax.ShapeDtypeStruct((N, Co, HW2), jnp.float32),
        grid_spec=pltpu.PrefetchScalarGridSpec(
            num_scalar_prefetch=0,
            grid=(N,),
            in_specs=[
                pl.BlockSpec((1, Cg, HW), lambda n: (n, 0, 0)),     # inputs
                pl.BlockSpec((1, Cx, HW2), lambda n: (n, 0, 0)),    # skip
                pl.BlockSpec((HW, HW2), lambda n: (0, 0)),          # upsample matrix
                pl.BlockSpec((9, HW2), lambda n: (0, 0)),           # halo masks
                pl.BlockSpec((Co, Cg), lambda n: (0, 0)),           # W_g
                pl.BlockSpec((Co, 1), lambda n: (0, 0)),
                pl.BlockSpec((Co, Cx), lambda n: (0, 0)),           # W_x
                pl.BlockSpec((Co, 1), lambda n: (0, 0)),
                pl.BlockSpec((Co, Co), lambda n: (0, 0)),           # psi
                pl.BlockSpec((Co, 1), lambda n: (0, 0)),
                pl.BlockSpec((Co, 9 * (Cg + Cx)), lambda n: (0, 0)),  # conv1 (im2col)
                pl.BlockSpec((Co, 1), lambda n: (0, 0)),
                pl.BlockSpec((Co, 9 * Co), lambda n: (0, 0)),         # conv2 (im2col)
                pl.BlockSpec((Co, 1), lambda n: (0, 0)),
            ],
            out_specs=pl.BlockSpec((1, Co, HW2), lambda n: (n, 0, 0)),
        ),
        compiler_params=pltpu.CompilerParams(
            dimension_semantics=("parallel",)),
    )(x2, s2, U, masks,
      params['wgT'], params['bg'], params['wxT'], params['bx'],
      params['wpT'], params['bp'], params['w1F'], params['b1'],
      params['w2F'], params['b2'])
    return out.reshape(N, Co, H2, W2)        # free reshape back to NCHW


# ------------------------------- parameters --------------------------------

def _bilinear_matrix(n_in, n_out):
    """(n_out, n_in) bilinear interpolation weights, align_corners=True."""
    out_idx = np.arange(n_out)
    src = out_idx * (n_in - 1) / max(n_out - 1, 1)
    i0 = np.floor(src).astype(np.int64)
    i1 = np.minimum(i0 + 1, n_in - 1)
    w1 = src - i0
    w0 = 1.0 - w1
    m = np.zeros((n_out, n_in), np.float64)
    m[out_idx, i0] += w0
    m[out_idx, i1] += w1
    return m


def _upsample_kron(H, W, H2, W2):
    """Kronecker matrix U (H*W, H2*W2): up_flat = x_flat @ U (per channel)."""
    uh = _bilinear_matrix(H, H2)   # (H2, H)
    uw = _bilinear_matrix(W, W2)   # (W2, W)
    return jnp.asarray(np.kron(uh.T, uw.T), jnp.float32)


def _conv_masks(H2, W2):
    """(9, H2*W2) validity masks for the circular-shift 3x3 halo handling."""
    hw2 = H2 * W2
    idx = np.arange(hw2)
    h, w = idx // W2, idx % W2
    m = np.zeros((9, hw2), np.float32)
    for k in range(9):
        dy, dx = k // 3 - 1, k % 3 - 1
        m[k] = ((h + dy >= 0) & (h + dy < H2) &
                (w + dx >= 0) & (w + dx < W2)).astype(np.float32)
    return jnp.asarray(m)


def _fold_bn(w, b, gamma, beta, mean, var, eps=1e-5):
    """Fold inference-mode BatchNorm into a conv whose out-channels are last."""
    scale = gamma / jnp.sqrt(var + eps)
    return w * scale, (b - mean) * scale + beta


def init_params(key, cg, cx, co):
    ks = iter(jax.random.split(key, 40))

    def bn(c):
        gamma = 1.0 + 0.1 * jax.random.normal(next(ks), (c,), jnp.float32)
        beta = 0.05 * jax.random.normal(next(ks), (c,), jnp.float32)
        mean = 0.02 * jax.random.normal(next(ks), (c,), jnp.float32)
        var = 1.0 + 0.2 * jax.random.uniform(next(ks), (c,), jnp.float32)
        return gamma, beta, mean, var

    def conv1x1_bn(cin, cout):
        w = 0.2 * jax.random.normal(next(ks), (cin, cout), jnp.float32)
        b = 0.1 * jax.random.normal(next(ks), (cout,), jnp.float32)
        wf, bf = _fold_bn(w, b, *bn(cout))
        return wf.T, bf.reshape(cout, 1)                  # channels-major layout

    def conv3x3_bn(cin, cout):
        w = 0.1 * jax.random.normal(next(ks), (3, 3, cin, cout), jnp.float32)
        b = 0.05 * jax.random.normal(next(ks), (cout,), jnp.float32)
        wf, bf = _fold_bn(w, b, *bn(cout))
        wt = jnp.transpose(wf.reshape(9, cin, cout), (0, 2, 1))       # (9, Co, Cin)
        wflat = jnp.transpose(wt, (1, 0, 2)).reshape(cout, 9 * cin)   # (Co, 9*Cin)
        return wt, wflat, bf.reshape(cout, 1)

    wgT, bg = conv1x1_bn(cg, co)               # W_g : conv1x1(in_c[0] -> out_c) + BN
    wxT, bx = conv1x1_bn(cx, co)               # W_x : conv1x1(in_c[1] -> out_c) + BN
    wpT, bp = conv1x1_bn(co, co)               # psi : conv1x1(out_c  -> out_c) + BN
    w1T, w1F, b1 = conv3x3_bn(cg + co, co)     # conv_block first  3x3 + BN
    w2T, w2F, b2 = conv3x3_bn(co, co)          # conv_block second 3x3 + BN
    return dict(wgT=wgT, bg=bg, wxT=wxT, bx=bx, wpT=wpT, bp=bp,
                w1T=w1T, w1F=w1F, b1=b1, w2T=w2T, w2F=w2F, b2=b2)


# ------------------------- pure-JAX reference check --------------------------

def reference_forward(params, inputs, skip, uh, uwt):
    up = jnp.einsum('oh,nchw->ncow', uh, inputs)
    up = jnp.einsum('ncow,wp->ncop', up, uwt)
    up_h = jnp.transpose(up, (0, 2, 3, 1))
    sk_h = jnp.transpose(skip, (0, 2, 3, 1))
    g1 = up_h @ params['wgT'].T + params['bg'][:, 0]
    x1 = sk_h @ params['wxT'].T + params['bx'][:, 0]
    a = jnp.maximum(g1 + x1, 0.0)
    psi = jax.nn.sigmoid(a @ params['wpT'].T + params['bp'][:, 0])
    att = sk_h * psi
    cat = jnp.concatenate([up_h, att], axis=-1)

    def conv(x, wt, b):                                   # wt: (9, Co, Cin)
        Hh, Ww = x.shape[1], x.shape[2]
        xp = jnp.pad(x, ((0, 0), (1, 1), (1, 1), (0, 0)))
        acc = jnp.zeros(x.shape[:3] + (wt.shape[1],), jnp.float32)
        for k in range(9):
            dy, dx = k // 3, k % 3
            acc = acc + jnp.einsum('nhwc,oc->nhwo',
                                   xp[:, dy:dy + Hh, dx:dx + Ww, :], wt[k])
        return jnp.maximum(acc + b[:, 0], 0.0)

    y = conv(cat, params['w1T'], params['b1'])
    y = conv(y, params['w2T'], params['b2'])
    return jnp.transpose(y, (0, 3, 1, 2))


# ---------------------------------- main -------------------------------------

if __name__ == "__main__":
    # decoder_block(in_c=[8, 8], out_c=8): inputs (N,8,8,8), skip (N,8,16,16)
    N, Cg, Cx, Co = 2, 8, 8, 8
    H = W = 8
    H2, W2 = 2 * H, 2 * W

    key = jax.random.PRNGKey(0)
    k_in, k_skip, k_par = jax.random.split(key, 3)
    inputs = jax.random.normal(k_in, (N, Cg, H, W), jnp.float32)
    skip = jax.random.normal(k_skip, (N, Cx, H2, W2), jnp.float32)
    params = init_params(k_par, Cg, Cx, Co)

    U = _upsample_kron(H, W, H2, W2)          # (H*W, H2*W2) Kronecker upsample
    masks = _conv_masks(H2, W2)               # (9, H2*W2) 3x3 halo masks

    out = jax.block_until_ready(decoder_block_forward(params, inputs, skip, U, masks))
    assert out.shape == (N, Co, H2, W2)

    uh = jnp.asarray(_bilinear_matrix(H, H2), jnp.float32)       # (H2, H)
    uwt = jnp.asarray(_bilinear_matrix(W, W2).T, jnp.float32)    # (W, W2)
    ref = jax.block_until_ready(reference_forward(params, inputs, skip, uh, uwt))
    np.testing.assert_allclose(np.asarray(out), np.asarray(ref), rtol=2e-2, atol=2e-2)

    print("KERNEL_OK")
</pallas_src>

<mosaic_0001>
module attributes {stable_mosaic.version = 11 : i64} {
  func.func @_decoder_block_kernel(%arg0: i32, %arg1: memref<1x8x64xf32, #tpu.memory_space<vmem>>, %arg2: memref<1x8x256xf32, #tpu.memory_space<vmem>>, %arg3: memref<64x256xf32, #tpu.memory_space<vmem>>, %arg4: memref<9x256xf32, #tpu.memory_space<vmem>>, %arg5: memref<8x8xf32, #tpu.memory_space<vmem>>, %arg6: memref<8x1xf32, #tpu.memory_space<vmem>>, %arg7: memref<8x8xf32, #tpu.memory_space<vmem>>, %arg8: memref<8x1xf32, #tpu.memory_space<vmem>>, %arg9: memref<8x8xf32, #tpu.memory_space<vmem>>, %arg10: memref<8x1xf32, #tpu.memory_space<vmem>>, %arg11: memref<8x144xf32, #tpu.memory_space<vmem>>, %arg12: memref<8x1xf32, #tpu.memory_space<vmem>>, %arg13: memref<8x72xf32, #tpu.memory_space<vmem>>, %arg14: memref<8x1xf32, #tpu.memory_space<vmem>>, %arg15: memref<1x8x256xf32, #tpu.memory_space<vmem>>) attributes {dimension_semantics = [#tpu.dimension_semantics<parallel>], iteration_bounds = array<i64: 2>, scalar_prefetch = 0 : i64, scratch_operands = 0 : i64, tpu.core_type = #tpu.core_type<tc>, window_params = [{transform_indices = @transform_0, window_bounds = array<i64: 1, 8, 64>}, {transform_indices = @transform_1, window_bounds = array<i64: 1, 8, 256>}, {pipeline_mode = #tpu.pipeline_mode<synchronous>, transform_indices = @transform_2, window_bounds = array<i64: 64, 256>}, {pipeline_mode = #tpu.pipeline_mode<synchronous>, transform_indices = @transform_3, window_bounds = array<i64: 9, 256>}, {pipeline_mode = #tpu.pipeline_mode<synchronous>, transform_indices = @transform_4, window_bounds = array<i64: 8, 8>}, {pipeline_mode = #tpu.pipeline_mode<synchronous>, transform_indices = @transform_5, window_bounds = array<i64: 8, 1>}, {pipeline_mode = #tpu.pipeline_mode<synchronous>, transform_indices = @transform_6, window_bounds = array<i64: 8, 8>}, {pipeline_mode = #tpu.pipeline_mode<synchronous>, transform_indices = @transform_7, window_bounds = array<i64: 8, 1>}, {pipeline_mode = #tpu.pipeline_mode<synchronous>, transform_indices = @transform_8, window_bounds = array<i64: 8, 8>}, {pipeline_mode = #tpu.pipeline_mode<synchronous>, transform_indices = @transform_9, window_bounds = array<i64: 8, 1>}, {pipeline_mode = #tpu.pipeline_mode<synchronous>, transform_indices = @transform_10, window_bounds = array<i64: 8, 144>}, {pipeline_mode = #tpu.pipeline_mode<synchronous>, transform_indices = @transform_11, window_bounds = array<i64: 8, 1>}, {pipeline_mode = #tpu.pipeline_mode<synchronous>, transform_indices = @transform_12, window_bounds = array<i64: 8, 72>}, {pipeline_mode = #tpu.pipeline_mode<synchronous>, transform_indices = @transform_13, window_bounds = array<i64: 8, 1>}, {transform_indices = @transform_14, window_bounds = array<i64: 1, 8, 256>}]} {
    %c0 = arith.constant 0 : index
    %c0_0 = arith.constant 0 : index
    %c0_1 = arith.constant 0 : index
    %0 = vector.load %arg1[%c0, %c0_0, %c0_1] : memref<1x8x64xf32, #tpu.memory_space<vmem>>, vector<1x8x64xf32>
    %1 = vector.shape_cast %0 : vector<1x8x64xf32> to vector<8x64xf32>
    %c0_2 = arith.constant 0 : index
    %c0_3 = arith.constant 0 : index
    %c0_4 = arith.constant 0 : index
    %2 = vector.load %arg2[%c0_2, %c0_3, %c0_4] : memref<1x8x256xf32, #tpu.memory_space<vmem>>, vector<1x8x256xf32>
    %3 = vector.shape_cast %2 : vector<1x8x256xf32> to vector<8x256xf32>
    %c0_5 = arith.constant 0 : index
    %c0_6 = arith.constant 0 : index
    %4 = vector.load %arg3[%c0_5, %c0_6] : memref<64x256xf32, #tpu.memory_space<vmem>>, vector<64x256xf32>
    %cst = arith.constant dense<0.000000e+00> : vector<8x256xf32>
    %5 = tpu.matmul %1, %4, %cst {dimension_numbers = #tpu.dot_dimension_numbers<[1], [0], [0], [1], [0, 0, 1, 1], [], []>} : vector<8x64xf32>, vector<64x256xf32>, vector<8x256xf32> -> vector<8x256xf32>
    %c0_7 = arith.constant 0 : index
    %c0_8 = arith.constant 0 : index
    %6 = vector.load %arg5[%c0_7, %c0_8] : memref<8x8xf32, #tpu.memory_space<vmem>>, vector<8x8xf32>
    %cst_9 = arith.constant dense<0.000000e+00> : vector<8x256xf32>
    %7 = tpu.matmul %6, %5, %cst_9 {dimension_numbers = #tpu.dot_dimension_numbers<[1], [0], [0], [1], [0, 0, 1, 1], [], []>} : vector<8x8xf32>, vector<8x256xf32>, vector<8x256xf32> -> vector<8x256xf32>
    %c0_10 = arith.constant 0 : index
    %c0_11 = arith.constant 0 : index
    %8 = vector.load %arg6[%c0_10, %c0_11] : memref<8x1xf32, #tpu.memory_space<vmem>>, vector<8x1xf32>
    %9 = vector.broadcast %8 : vector<8x1xf32> to vector<8x256xf32>
    %10 = arith.addf %7, %9 : vector<8x256xf32>
    %c0_12 = arith.constant 0 : index
    %c0_13 = arith.constant 0 : index
    %11 = vector.load %arg7[%c0_12, %c0_13] : memref<8x8xf32, #tpu.memory_space<vmem>>, vector<8x8xf32>
    %cst_14 = arith.constant dense<0.000000e+00> : vector<8x256xf32>
    %12 = tpu.matmul %11, %3, %cst_14 {dimension_numbers = #tpu.dot_dimension_numbers<[1], [0], [0], [1], [0, 0, 1, 1], [], []>} : vector<8x8xf32>, vector<8x256xf32>, vector<8x256xf32> -> vector<8x256xf32>
    %c0_15 = arith.constant 0 : index
    %c0_16 = arith.constant 0 : index
    %13 = vector.load %arg8[%c0_15, %c0_16] : memref<8x1xf32, #tpu.memory_space<vmem>>, vector<8x1xf32>
    %14 = vector.broadcast %13 : vector<8x1xf32> to vector<8x256xf32>
    %15 = arith.addf %12, %14 : vector<8x256xf32>
    %16 = arith.addf %10, %15 : vector<8x256xf32>
    %cst_17 = arith.constant 0.000000e+00 : f32
    %17 = vector.broadcast %cst_17 : f32 to vector<8x256xf32>
    %18 = arith.maximumf %16, %17 : vector<8x256xf32>
    %c0_18 = arith.constant 0 : index
    %c0_19 = arith.constant 0 : index
    %19 = vector.load %arg9[%c0_18, %c0_19] : memref<8x8xf32, #tpu.memory_space<vmem>>, vector<8x8xf32>
    %cst_20 = arith.constant dense<0.000000e+00> : vector<8x256xf32>
    %20 = tpu.matmul %19, %18, %cst_20 {dimension_numbers = #tpu.dot_dimension_numbers<[1], [0], [0], [1], [0, 0, 1, 1], [], []>} : vector<8x8xf32>, vector<8x256xf32>, vector<8x256xf32> -> vector<8x256xf32>
    %c0_21 = arith.constant 0 : index
    %c0_22 = arith.constant 0 : index
    %21 = vector.load %arg10[%c0_21, %c0_22] : memref<8x1xf32, #tpu.memory_space<vmem>>, vector<8x1xf32>
    %22 = vector.broadcast %21 : vector<8x1xf32> to vector<8x256xf32>
    %23 = arith.addf %20, %22 : vector<8x256xf32>
    %24 = arith.negf %23 : vector<8x256xf32>
    %25 = math.exp %24 : vector<8x256xf32>
    %cst_23 = arith.constant 1.000000e+00 : f32
    %26 = vector.broadcast %cst_23 : f32 to vector<8x256xf32>
    %27 = arith.addf %26, %25 : vector<8x256xf32>
    %28 = arith.divf %26, %27 : vector<8x256xf32>
    %29 = arith.mulf %3, %28 : vector<8x256xf32>
    %30 = tpu.concatenate %5, %29 in 0 : vector<8x256xf32>, vector<8x256xf32> -> vector<16x256xf32>
    %c0_24 = arith.constant 0 : index
    %c0_25 = arith.constant 0 : index
    %31 = vector.load %arg4[%c0_24, %c0_25] : memref<9x256xf32, #tpu.memory_space<vmem>>, vector<9x256xf32>
    %32 = vector.extract_strided_slice %30 {offsets = [0, 239], sizes = [16, 17], strides = [1, 1]} : vector<16x256xf32> to vector<16x17xf32>
    %33 = vector.extract_strided_slice %30 {offsets = [0, 0], sizes = [16, 239], strides = [1, 1]} : vector<16x256xf32> to vector<16x239xf32>
    %34 = tpu.concatenate %32, %33 in 1 : vector<16x17xf32>, vector<16x239xf32> -> vector<16x256xf32>
    %35 = vector.extract_strided_slice %31 {offsets = [0, 0], sizes = [1, 256], strides = [1, 1]} : vector<9x256xf32> to vector<1x256xf32>
    %36 = vector.broadcast %35 : vector<1x256xf32> to vector<16x256xf32>
    %37 = arith.mulf %34, %36 : vector<16x256xf32>
    %38 = vector.extract_strided_slice %30 {offsets = [0, 240], sizes = [16, 16], strides = [1, 1]} : vector<16x256xf32> to vector<16x16xf32>
    %39 = vector.extract_strided_slice %30 {offsets = [0, 0], sizes = [16, 240], strides = [1, 1]} : vector<16x256xf32> to vector<16x240xf32>
    %40 = tpu.concatenate %38, %39 in 1 : vector<16x16xf32>, vector<16x240xf32> -> vector<16x256xf32>
    %41 = vector.extract_strided_slice %31 {offsets = [1, 0], sizes = [1, 256], strides = [1, 1]} : vector<9x256xf32> to vector<1x256xf32>
    %42 = vector.broadcast %41 : vector<1x256xf32> to vector<16x256xf32>
    %43 = arith.mulf %40, %42 : vector<16x256xf32>
    %44 = vector.extract_strided_slice %30 {offsets = [0, 241], sizes = [16, 15], strides = [1, 1]} : vector<16x256xf32> to vector<16x15xf32>
    %45 = vector.extract_strided_slice %30 {offsets = [0, 0], sizes = [16, 241], strides = [1, 1]} : vector<16x256xf32> to vector<16x241xf32>
    %46 = tpu.concatenate %44, %45 in 1 : vector<16x15xf32>, vector<16x241xf32> -> vector<16x256xf32>
    %47 = vector.extract_strided_slice %31 {offsets = [2, 0], sizes = [1, 256], strides = [1, 1]} : vector<9x256xf32> to vector<1x256xf32>
    %48 = vector.broadcast %47 : vector<1x256xf32> to vector<16x256xf32>
    %49 = arith.mulf %46, %48 : vector<16x256xf32>
    %50 = vector.extract_strided_slice %30 {offsets = [0, 255], sizes = [16, 1], strides = [1, 1]} : vector<16x256xf32> to vector<16x1xf32>
    %51 = vector.extract_strided_slice %30 {offsets = [0, 0], sizes = [16, 255], strides = [1, 1]} : vector<16x256xf32> to vector<16x255xf32>
    %52 = tpu.concatenate %50, %51 in 1 : vector<16x1xf32>, vector<16x255xf32> -> vector<16x256xf32>
    %53 = vector.extract_strided_slice %31 {offsets = [3, 0], sizes = [1, 256], strides = [1, 1]} : vector<9x256xf32> to vector<1x256xf32>
    %54 = vector.broadcast %53 : vector<1x256xf32> to vector<16x256xf32>
    %55 = arith.mulf %52, %54 : vector<16x256xf32>
    %56 = vector.extract_strided_slice %31 {offsets = [4, 0], sizes = [1, 256], strides = [1, 1]} : vector<9x256xf32> to vector<1x256xf32>
    %57 = vector.broadcast %56 : vector<1x256xf32> to vector<16x256xf32>
    %58 = arith.mulf %30, %57 : vector<16x256xf32>
    %59 = vector.extract_strided_slice %30 {offsets = [0, 1], sizes = [16, 255], strides = [1, 1]} : vector<16x256xf32> to vector<16x255xf32>
    %60 = vector.extract_strided_slice %30 {offsets = [0, 0], sizes = [16, 1], strides = [1, 1]} : vector<16x256xf32> to vector<16x1xf32>
    %61 = tpu.concatenate %59, %60 in 1 : vector<16x255xf32>, vector<16x1xf32> -> vector<16x256xf32>
    %62 = vector.extract_strided_slice %31 {offsets = [5, 0], sizes = [1, 256], strides = [1, 1]} : vector<9x256xf32> to vector<1x256xf32>
    %63 = vector.broadcast %62 : vector<1x256xf32> to vector<16x256xf32>
    %64 = arith.mulf %61, %63 : vector<16x256xf32>
    %65 = vector.extract_strided_slice %30 {offsets = [0, 15], sizes = [16, 241], strides = [1, 1]} : vector<16x256xf32> to vector<16x241xf32>
    %66 = vector.extract_strided_slice %30 {offsets = [0, 0], sizes = [16, 15], strides = [1, 1]} : vector<16x256xf32> to vector<16x15xf32>
    %67 = tpu.concatenate %65, %66 in 1 : vector<16x241xf32>, vector<16x15xf32> -> vector<16x256xf32>
    %68 = vector.extract_strided_slice %31 {offsets = [6, 0], sizes = [1, 256], strides = [1, 1]} : vector<9x256xf32> to vector<1x256xf32>
    %69 = vector.broadcast %68 : vector<1x256xf32> to vector<16x256xf32>
    %70 = arith.mulf %67, %69 : vector<16x256xf32>
    %71 = vector.extract_strided_slice %30 {offsets = [0, 16], sizes = [16, 240], strides = [1, 1]} : vector<16x256xf32> to vector<16x240xf32>
    %72 = vector.extract_strided_slice %30 {offsets = [0, 0], sizes = [16, 16], strides = [1, 1]} : vector<16x256xf32> to vector<16x16xf32>
    %73 = tpu.concatenate %71, %72 in 1 : vector<16x240xf32>, vector<16x16xf32> -> vector<16x256xf32>
    %74 = vector.extract_strided_slice %31 {offsets = [7, 0], sizes = [1, 256], strides = [1, 1]} : vector<9x256xf32> to vector<1x256xf32>
    %75 = vector.broadcast %74 : vector<1x256xf32> to vector<16x256xf32>
    %76 = arith.mulf %73, %75 : vector<16x256xf32>
    %77 = vector.extract_strided_slice %30 {offsets = [0, 17], sizes = [16, 239], strides = [1, 1]} : vector<16x256xf32> to vector<16x239xf32>
    %78 = vector.extract_strided_slice %30 {offsets = [0, 0], sizes = [16, 17], strides = [1, 1]} : vector<16x256xf32> to vector<16x17xf32>
    %79 = tpu.concatenate %77, %78 in 1 : vector<16x239xf32>, vector<16x17xf32> -> vector<16x256xf32>
    %80 = vector.extract_strided_slice %31 {offsets = [8, 0], sizes = [1, 256], strides = [1, 1]} : vector<9x256xf32> to vector<1x256xf32>
    %81 = vector.broadcast %80 : vector<1x256xf32> to vector<16x256xf32>
    %82 = arith.mulf %79, %81 : vector<16x256xf32>
    %83 = tpu.concatenate %37, %43, %49, %55, %58, %64, %70, %76, %82 in 0 : vector<16x256xf32>, vector<16x256xf32>, vector<16x256xf32>, vector<16x256xf32>, vector<16x256xf32>, vector<16x256xf32>, vector<16x256xf32>, vector<16x256xf32>, vector<16x256xf32> -> vector<144x256xf32>
    %84 = arith.truncf %83 : vector<144x256xf32> to vector<144x256xbf16>
    %c0_26 = arith.constant 0 : index
    %c0_27 = arith.constant 0 : index
    %85 = vector.load %arg11[%c0_26, %c0_27] : memref<8x144xf32, #tpu.memory_space<vmem>>, vector<8x144xf32>
    %86 = arith.truncf %85 : vector<8x144xf32> to vector<8x144xbf16>
    %cst_28 = arith.constant dense<0.000000e+00> : vector<8x256xf32>
    %87 = tpu.matmul %86, %84, %cst_28 {dimension_numbers = #tpu.dot_dimension_numbers<[1], [0], [0], [1], [0, 0, 1, 1], [], []>} : vector<8x144xbf16>, vector<144x256xbf16>, vector<8x256xf32> -> vector<8x256xf32>
    %c0_29 = arith.constant 0 : index
    %c0_30 = arith.constant 0 : index
    %88 = vector.load %arg12[%c0_29, %c0_30] : memref<8x1xf32, #tpu.memory_space<vmem>>, vector<8x1xf32>
    %89 = vector.broadcast %88 : vector<8x1xf32> to vector<8x256xf32>
    %90 = arith.addf %87, %89 : vector<8x256xf32>
    %cst_31 = arith.constant 0.000000e+00 : f32
    %91 = vector.broadcast %cst_31 : f32 to vector<8x256xf32>
    %92 = arith.maximumf %90, %91 : vector<8x256xf32>
    %93 = vector.extract_strided_slice %92 {offsets = [0, 239], sizes = [8, 17], strides = [1, 1]} : vector<8x256xf32> to vector<8x17xf32>
    %94 = vector.extract_strided_slice %92 {offsets = [0, 0], sizes = [8, 239], strides = [1, 1]} : vector<8x256xf32> to vector<8x239xf32>
    %95 = tpu.concatenate %93, %94 in 1 : vector<8x17xf32>, vector<8x239xf32> -> vector<8x256xf32>
    %96 = vector.extract_strided_slice %31 {offsets = [0, 0], sizes = [1, 256], strides = [1, 1]} : vector<9x256xf32> to vector<1x256xf32>
    %97 = vector.broadcast %96 : vector<1x256xf32> to vector<8x256xf32>
    %98 = arith.mulf %95, %97 : vector<8x256xf32>
    %99 = vector.extract_strided_slice %92 {offsets = [0, 240], sizes = [8, 16], strides = [1, 1]} : vector<8x256xf32> to vector<8x16xf32>
    %100 = vector.extract_strided_slice %92 {offsets = [0, 0], sizes = [8, 240], strides = [1, 1]} : vector<8x256xf32> to vector<8x240xf32>
    %101 = tpu.concatenate %99, %100 in 1 : vector<8x16xf32>, vector<8x240xf32> -> vector<8x256xf32>
    %102 = vector.extract_strided_slice %31 {offsets = [1, 0], sizes = [1, 256], strides = [1, 1]} : vector<9x256xf32> to vector<1x256xf32>
    %103 = vector.broadcast %102 : vector<1x256xf32> to vector<8x256xf32>
    %104 = arith.mulf %101, %103 : vector<8x256xf32>
    %105 = vector.extract_strided_slice %92 {offsets = [0, 241], sizes = [8, 15], strides = [1, 1]} : vector<8x256xf32> to vector<8x15xf32>
    %106 = vector.extract_strided_slice %92 {offsets = [0, 0], sizes = [8, 241], strides = [1, 1]} : vector<8x256xf32> to vector<8x241xf32>
    %107 = tpu.concatenate %105, %106 in 1 : vector<8x15xf32>, vector<8x241xf32> -> vector<8x256xf32>
    %108 = vector.extract_strided_slice %31 {offsets = [2, 0], sizes = [1, 256], strides = [1, 1]} : vector<9x256xf32> to vector<1x256xf32>
    %109 = vector.broadcast %108 : vector<1x256xf32> to vector<8x256xf32>
    %110 = arith.mulf %107, %109 : vector<8x256xf32>
    %111 = vector.extract_strided_slice %92 {offsets = [0, 255], sizes = [8, 1], strides = [1, 1]} : vector<8x256xf32> to vector<8x1xf32>
    %112 = vector.extract_strided_slice %92 {offsets = [0, 0], sizes = [8, 255], strides = [1, 1]} : vector<8x256xf32> to vector<8x255xf32>
    %113 = tpu.concatenate %111, %112 in 1 : vector<8x1xf32>, vector<8x255xf32> -> vector<8x256xf32>
    %114 = vector.extract_strided_slice %31 {offsets = [3, 0], sizes = [1, 256], strides = [1, 1]} : vector<9x256xf32> to vector<1x256xf32>
    %115 = vector.broadcast %114 : vector<1x256xf32> to vector<8x256xf32>
    %116 = arith.mulf %113, %115 : vector<8x256xf32>
    %117 = vector.extract_strided_slice %31 {offsets = [4, 0], sizes = [1, 256], strides = [1, 1]} : vector<9x256xf32> to vector<1x256xf32>
    %118 = vector.broadcast %117 : vector<1x256xf32> to vector<8x256xf32>
    %119 = arith.mulf %92, %118 : vector<8x256xf32>
    %120 = vector.extract_strided_slice %92 {offsets = [0, 1], sizes = [8, 255], strides = [1, 1]} : vector<8x256xf32> to vector<8x255xf32>
    %121 = vector.extract_strided_slice %92 {offsets = [0, 0], sizes = [8, 1], strides = [1, 1]} : vector<8x256xf32> to vector<8x1xf32>
    %122 = tpu.concatenate %120, %121 in 1 : vector<8x255xf32>, vector<8x1xf32> -> vector<8x256xf32>
    %123 = vector.extract_strided_slice %31 {offsets = [5, 0], sizes = [1, 256], strides = [1, 1]} : vector<9x256xf32> to vector<1x256xf32>
    %124 = vector.broadcast %123 : vector<1x256xf32> to vector<8x256xf32>
    %125 = arith.mulf %122, %124 : vector<8x256xf32>
    %126 = vector.extract_strided_slice %92 {offsets = [0, 15], sizes = [8, 241], strides = [1, 1]} : vector<8x256xf32> to vector<8x241xf32>
    %127 = vector.extract_strided_slice %92 {offsets = [0, 0], sizes = [8, 15], strides = [1, 1]} : vector<8x256xf32> to vector<8x15xf32>
    %128 = tpu.concatenate %126, %127 in 1 : vector<8x241xf32>, vector<8x15xf32> -> vector<8x256xf32>
    %129 = vector.extract_strided_slice %31 {offsets = [6, 0], sizes = [1, 256], strides = [1, 1]} : vector<9x256xf32> to vector<1x256xf32>
    %130 = vector.broadcast %129 : vector<1x256xf32> to vector<8x256xf32>
    %131 = arith.mulf %128, %130 : vector<8x256xf32>
    %132 = vector.extract_strided_slice %92 {offsets = [0, 16], sizes = [8, 240], strides = [1, 1]} : vector<8x256xf32> to vector<8x240xf32>
    %133 = vector.extract_strided_slice %92 {offsets = [0, 0], sizes = [8, 16], strides = [1, 1]} : vector<8x256xf32> to vector<8x16xf32>
    %134 = tpu.concatenate %132, %133 in 1 : vector<8x240xf32>, vector<8x16xf32> -> vector<8x256xf32>
    %135 = vector.extract_strided_slice %31 {offsets = [7, 0], sizes = [1, 256], strides = [1, 1]} : vector<9x256xf32> to vector<1x256xf32>
    %136 = vector.broadcast %135 : vector<1x256xf32> to vector<8x256xf32>
    %137 = arith.mulf %134, %136 : vector<8x256xf32>
    %138 = vector.extract_strided_slice %92 {offsets = [0, 17], sizes = [8, 239], strides = [1, 1]} : vector<8x256xf32> to vector<8x239xf32>
    %139 = vector.extract_strided_slice %92 {offsets = [0, 0], sizes = [8, 17], strides = [1, 1]} : vector<8x256xf32> to vector<8x17xf32>
    %140 = tpu.concatenate %138, %139 in 1 : vector<8x239xf32>, vector<8x17xf32> -> vector<8x256xf32>
    %141 = vector.extract_strided_slice %31 {offsets = [8, 0], sizes = [1, 256], strides = [1, 1]} : vector<9x256xf32> to vector<1x256xf32>
    %142 = vector.broadcast %141 : vector<1x256xf32> to vector<8x256xf32>
    %143 = arith.mulf %140, %142 : vector<8x256xf32>
    %144 = tpu.concatenate %98, %104, %110, %116, %119, %125, %131, %137, %143 in 0 : vector<8x256xf32>, vector<8x256xf32>, vector<8x256xf32>, vector<8x256xf32>, vector<8x256xf32>, vector<8x256xf32>, vector<8x256xf32>, vector<8x256xf32>, vector<8x256xf32> -> vector<72x256xf32>
    %145 = arith.truncf %144 : vector<72x256xf32> to vector<72x256xbf16>
    %c0_32 = arith.constant 0 : index
    %c0_33 = arith.constant 0 : index
    %146 = vector.load %arg13[%c0_32, %c0_33] : memref<8x72xf32, #tpu.memory_space<vmem>>, vector<8x72xf32>
    %147 = arith.truncf %146 : vector<8x72xf32> to vector<8x72xbf16>
    %cst_34 = arith.constant dense<0.000000e+00> : vector<8x256xf32>
    %148 = tpu.matmul %147, %145, %cst_34 {dimension_numbers = #tpu.dot_dimension_numbers<[1], [0], [0], [1], [0, 0, 1, 1], [], []>} : vector<8x72xbf16>, vector<72x256xbf16>, vector<8x256xf32> -> vector<8x256xf32>
    %c0_35 = arith.constant 0 : index
    %c0_36 = arith.constant 0 : index
    %149 = vector.load %arg14[%c0_35, %c0_36] : memref<8x1xf32, #tpu.memory_space<vmem>>, vector<8x1xf32>
    %150 = vector.broadcast %149 : vector<8x1xf32> to vector<8x256xf32>
    %151 = arith.addf %148, %150 : vector<8x256xf32>
    %cst_37 = arith.constant 0.000000e+00 : f32
    %152 = vector.broadcast %cst_37 : f32 to vector<8x256xf32>
    %153 = arith.maximumf %151, %152 : vector<8x256xf32>
    %c0_38 = arith.constant 0 : index
    %c0_39 = arith.constant 0 : index
    %c0_40 = arith.constant 0 : index
    %154 = vector.load %arg15[%c0_38, %c0_39, %c0_40] : memref<1x8x256xf32, #tpu.memory_space<vmem>>, vector<1x8x256xf32>
    %155 = vector.shape_cast %154 : vector<1x8x256xf32> to vector<8x256xf32>
    %156 = vector.shape_cast %153 : vector<8x256xf32> to vector<1x8x256xf32>
    tpu.vector_store %arg15[%c0_38, %c0_39, %c0_40], %156 {strides = array<i32>} : memref<1x8x256xf32, #tpu.memory_space<vmem>>, vector<1x8x256xf32>,
    return
  }
  func.func @transform_0(%arg0: i32) -> (i32, i32, i32) {
    %c0_i32 = arith.constant 0 : i32
    %c0_i32_0 = arith.constant 0 : i32
    %c0_i32_1 = arith.constant 0 : i32
    return %arg0, %c0_i32, %c0_i32_0 : i32, i32, i32
  }
  func.func @transform_1(%arg0: i32) -> (i32, i32, i32) {
    %c0_i32 = arith.constant 0 : i32
    %c0_i32_0 = arith.constant 0 : i32
    %c0_i32_1 = arith.constant 0 : i32
    return %arg0, %c0_i32, %c0_i32_0 : i32, i32, i32
  }
  func.func @transform_2(%arg0: i32) -> (i32, i32) {
    %c0_i32 = arith.constant 0 : i32
    %c0_i32_0 = arith.constant 0 : i32
    %c0_i32_1 = arith.constant 0 : i32
    return %c0_i32, %c0_i32_0 : i32, i32
  }
  func.func @transform_3(%arg0: i32) -> (i32, i32) {
    %c0_i32 = arith.constant 0 : i32
    %c0_i32_0 = arith.constant 0 : i32
    %c0_i32_1 = arith.constant 0 : i32
    return %c0_i32, %c0_i32_0 : i32, i32
  }
  func.func @transform_4(%arg0: i32) -> (i32, i32) {
    %c0_i32 = arith.constant 0 : i32
    %c0_i32_0 = arith.constant 0 : i32
    %c0_i32_1 = arith.constant 0 : i32
    return %c0_i32, %c0_i32_0 : i32, i32
  }
  func.func @transform_5(%arg0: i32) -> (i32, i32) {
    %c0_i32 = arith.constant 0 : i32
    %c0_i32_0 = arith.constant 0 : i32
    %c0_i32_1 = arith.constant 0 : i32
    return %c0_i32, %c0_i32_0 : i32, i32
  }
  func.func @transform_6(%arg0: i32) -> (i32, i32) {
    %c0_i32 = arith.constant 0 : i32
    %c0_i32_0 = arith.constant 0 : i32
    %c0_i32_1 = arith.constant 0 : i32
    return %c0_i32, %c0_i32_0 : i32, i32
  }
  func.func @transform_7(%arg0: i32) -> (i32, i32) {
    %c0_i32 = arith.constant 0 : i32
    %c0_i32_0 = arith.constant 0 : i32
    %c0_i32_1 = arith.constant 0 : i32
    return %c0_i32, %c0_i32_0 : i32, i32
  }
  func.func @transform_8(%arg0: i32) -> (i32, i32) {
    %c0_i32 = arith.constant 0 : i32
    %c0_i32_0 = arith.constant 0 : i32
    %c0_i32_1 = arith.constant 0 : i32
    return %c0_i32, %c0_i32_0 : i32, i32
  }
  func.func @transform_9(%arg0: i32) -> (i32, i32) {
    %c0_i32 = arith.constant 0 : i32
    %c0_i32_0 = arith.constant 0 : i32
    %c0_i32_1 = arith.constant 0 : i32
    return %c0_i32, %c0_i32_0 : i32, i32
  }
  func.func @transform_10(%arg0: i32) -> (i32, i32) {
    %c0_i32 = arith.constant 0 : i32
    %c0_i32_0 = arith.constant 0 : i32
    %c0_i32_1 = arith.constant 0 : i32
    return %c0_i32, %c0_i32_0 : i32, i32
  }
  func.func @transform_11(%arg0: i32) -> (i32, i32) {
    %c0_i32 = arith.constant 0 : i32
    %c0_i32_0 = arith.constant 0 : i32
    %c0_i32_1 = arith.constant 0 : i32
    return %c0_i32, %c0_i32_0 : i32, i32
  }
  func.func @transform_12(%arg0: i32) -> (i32, i32) {
    %c0_i32 = arith.constant 0 : i32
    %c0_i32_0 = arith.constant 0 : i32
    %c0_i32_1 = arith.constant 0 : i32
    return %c0_i32, %c0_i32_0 : i32, i32
  }
  func.func @transform_13(%arg0: i32) -> (i32, i32) {
    %c0_i32 = arith.constant 0 : i32
    %c0_i32_0 = arith.constant 0 : i32
    %c0_i32_1 = arith.constant 0 : i32
    return %c0_i32, %c0_i32_0 : i32, i32
  }
  func.func @transform_14(%arg0: i32) -> (i32, i32, i32) {
    %c0_i32 = arith.constant 0 : i32
    %c0_i32_0 = arith.constant 0 : i32
    %c0_i32_1 = arith.constant 0 : i32
    return %arg0, %c0_i32, %c0_i32_0 : i32, i32, i32
  }
}

</mosaic_0001>

<llo_original>
// kernel: tpu_custom_call.1
$region0: #{tpu_custom_call.1}
  #allocation0 [shape = 'u32[]', space=smem, size = 0x4, offset = 0x4, fixed_abs, tag = 'smem constant byte address 0x4 - core index']
  #allocation1 [shape = 'u32[144,128]{1,0:T(1,128)}', space=vmem, size = 0x12000, scoped, tag = 'internal scratch']
  %s0 = inlined_call_operand.vmem [shape: f32[2,8,64], index: 0, kind: input, shape index: {}]
  %s1 = inlined_call_operand.vmem [shape: f32[2,8,256], index: 1, kind: input, shape index: {}]
  %s2 = inlined_call_operand.hbm [shape: f32[64,256], index: 2, kind: input, shape index: {}]
  %s3 = inlined_call_operand.hbm [shape: f32[9,256], index: 3, kind: input, shape index: {}]
  %s4 = inlined_call_operand.hbm [shape: f32[8,8], index: 4, kind: input, shape index: {}]
  %s5 = inlined_call_operand.vmem [shape: f32[8,1], index: 5, kind: input, shape index: {}]
  %s6 = inlined_call_operand.hbm [shape: f32[8,8], index: 6, kind: input, shape index: {}]
  %s7 = inlined_call_operand.vmem [shape: f32[8,1], index: 7, kind: input, shape index: {}]
  %s8 = inlined_call_operand.vmem [shape: f32[8,8], index: 8, kind: input, shape index: {}]
  %s9 = inlined_call_operand.vmem [shape: f32[8,1], index: 9, kind: input, shape index: {}]
  %s10 = inlined_call_operand.vmem [shape: f32[8,144], index: 10, kind: input, shape index: {}]
  %s11 = inlined_call_operand.vmem [shape: f32[8,1], index: 11, kind: input, shape index: {}]
  %s12 = inlined_call_operand.vmem [shape: f32[8,72], index: 12, kind: input, shape index: {}]
  %s13 = inlined_call_operand.vmem [shape: f32[8,1], index: 13, kind: input, shape index: {}]
  %s14 = inlined_call_operand.hbm [shape: f32[2,8,256], index: 14, kind: output, shape index: {}]
  %s15 = sld [smem:[#allocation0]]
  $region105: #{tpu_custom_call.1} parent=0
    _
  %s17 = ssub.s32 1, %s15
  %s18 = scalar_select 0, %s17, %s15
  $region1: #{tpu_custom_call.1} parent=0
    #allocation2 [shape = 'u8[65536]{0}', space=vmem, size = 0x10000, scoped, tag = 'input window, operand 2, single buffered']
    #allocation3 [shape = 's32[2]{0}', space=sflag, size = 0x8, scoped, tag = 'scoped memory for tpu_custom_call.1']
    #allocation4 [shape = 's32[2]{0}', space=sflag, size = 0x8, scoped, tag = 'scoped memory for tpu_custom_call.1']
    #allocation5 [shape = 'u8[16384]{0}', space=vmem, size = 0x4000, scoped, tag = 'input window, operand 3, single buffered']
    #allocation6 [shape = 's32[1]{0}', space=sflag, size = 0x4, scoped, tag = 'scoped memory for tpu_custom_call.1']
    #allocation7 [shape = 'u8[4096]{0}', space=vmem, size = 0x1000, scoped, tag = 'input window, operand 4, single buffered']
    #allocation8 [shape = 'u8[4096]{0}', space=vmem, size = 0x1000, scoped, tag = 'input window, operand 6, single buffered']
    #allocation9 [shape = 's32[1]{0}', space=sflag, size = 0x4, scoped, tag = 'scoped memory for tpu_custom_call.1']
    #allocation10 [shape = 'u8[16384]{0}', space=vmem, size = 0x4000, scoped, tag = 'output window, operand 0']
    %19 = vsyncpa [#allocation3], 0
    %20 = vsyncpa [#allocation6], 0
    %21 = vsyncpa [#allocation9], 0
    %22 = vsyncpa [#allocation4], 0
    %s23 = scalar_lea.sflag [#allocation4], 1
    %24 = vsyncpa %s23, 0
    loop: start=0, step=1, limit=4
    $region2: #{tpu_custom_call.1} parent=1 // loop_pre_header
      _
    $region3: #{tpu_custom_call.1} parent=1 // loop_header
      %s26 = sphi 0, %s30
      %p27 = scmp.ge.s32.totalorder %s26, 4
      %s36 = sphi 0, %s38
      %s39 = sphi 0, %s36
      %s40 = sphi 0, %s39
      %s56 = sphi 0, %s40
      %s62 = sphi 0, %s64
      %s65 = sphi 0, %s62
      %s66 = sphi 0, %s65
      %s82 = sphi 0, %s66
      %s86 = sphi 0, %s86
      %s88 = sphi 0, %s86
      %s89 = sphi 0, %s88
      %s103 = sphi 0, %s89
      %s107 = sphi 0, %s107
      %s109 = sphi 0, %s107
      %s110 = sphi 0, %s109
      %s124 = sphi 0, %s110
      %s128 = sphi 0, %s128
      %s130 = sphi 0, %s128
      %s131 = sphi 0, %s130
      %s145 = sphi 0, %s131
      %s149 = sphi 0, %s149
      %s151 = sphi 0, %s149
      %s152 = sphi 0, %s151
      %s166 = sphi 0, %s152
      %s170 = sphi 0, %s170
      %s172 = sphi 0, %s170
      %s173 = sphi 0, %s172
      %s187 = sphi 0, %s173
      %s191 = sphi 0, %s191
      %s193 = sphi 0, %s191
      %s194 = sphi 0, %s193
      %s208 = sphi 0, %s194
      %s212 = sphi 0, %s212
      %s214 = sphi 0, %s212
      %s215 = sphi 0, %s214
      %s229 = sphi 0, %s215
      %s233 = sphi 0, %s233
      %s235 = sphi 0, %s233
      %s236 = sphi 0, %s235
      %s250 = sphi 0, %s236
      %s254 = sphi 0, %s254
      %s256 = sphi 0, %s254
      %s257 = sphi 0, %s256
      %s271 = sphi 0, %s257
      %s275 = sphi 0, %s275
      %s277 = sphi 0, %s275
      %s278 = sphi 0, %s277
      %s292 = sphi 0, %s278
      %s296 = sphi 0, %s296
      %s298 = sphi 0, %s296
      %s299 = sphi 0, %s298
      %s313 = sphi 0, %s299
      %s317 = sphi 0, %s317
      %s319 = sphi 0, %s317
      %s320 = sphi 0, %s319
      %s334 = sphi 0, %s320
      %s340 = sphi 0, %s342
      %s343 = sphi 0, %s340
      %s344 = sphi 0, %s343
      %s360 = sphi 0, %s344
    $region4: #{tpu_custom_call.1} parent=1 // loop_header_branch
      %29 = sbr.rel (%p27) target = $region8
    $region5: #{tpu_custom_call.1} parent=1 // loop_body
      %s31 = ssub.s32 %s26, 1
      %s32 = ssub.s32 %s26, 2
      %s33 = sadd.s32 %s26, 1
      %s34 = ssub.s32 %s26, %s33
      %p35 = scmp.eq.s32.totalorder %s34, 0
      %s37 = sadd.s32 %s36, 1
      %s38 = scalar_select %p35, %s36, %s37
      %p41 = pneg %p35
      %p42 = scmp.eq.s32.totalorder %s26, 1
      %p43 = por %p41, %p42
      %p44 = scmp.ne.s32.totalorder %s36, %s39
      %p45 = scmp.eq.s32.totalorder %s26, 0
      %p46 = por %p44, %p45
      %p47 = scmp.ne.s32.totalorder %s36, %s39
      %p48 = scmp.eq.s32.totalorder %s31, 1
      %p49 = por %p47, %p48
      %p50 = scmp.ne.s32.totalorder %s39, %s40
      %p51 = scmp.eq.s32.totalorder %s31, 0
      %p52 = por %p50, %p51
      %p53 = scmp.ne.s32.totalorder %s39, %s40
      %p54 = scmp.eq.s32.totalorder %s32, 1
      %p55 = por %p53, %p54
      %p57 = scmp.ne.s32.totalorder %s40, %s56
      %p58 = scmp.eq.s32.totalorder %s32, 0
      %p59 = por %p57, %p58
      %s60 = ssub.s32 %s26, %s33
      %p61 = scmp.eq.s32.totalorder %s60, 0
      %s63 = sadd.s32 %s62, 1
      %s64 = scalar_select %p61, %s62, %s63
      %p67 = pneg %p61
      %p68 = scmp.eq.s32.totalorder %s26, 1
      %p69 = por %p67, %p68
      %p70 = scmp.ne.s32.totalorder %s62, %s65
      %p71 = scmp.eq.s32.totalorder %s26, 0
      %p72 = por %p70, %p71
      %p73 = scmp.ne.s32.totalorder %s62, %s65
      %p74 = scmp.eq.s32.totalorder %s31, 1
      %p75 = por %p73, %p74
      %p76 = scmp.ne.s32.totalorder %s65, %s66
      %p77 = scmp.eq.s32.totalorder %s31, 0
      %p78 = por %p76, %p77
      %p79 = scmp.ne.s32.totalorder %s65, %s66
      %p80 = scmp.eq.s32.totalorder %s32, 1
      %p81 = por %p79, %p80
      %p83 = scmp.ne.s32.totalorder %s66, %s82
      %p84 = scmp.eq.s32.totalorder %s32, 0
      %p85 = por %p83, %p84
      %s87 = sadd.s32 %s86, 1
      %p90 = scmp.eq.s32.totalorder %s26, 1
      %p91 = scmp.ne.s32.totalorder %s86, %s88
      %p92 = scmp.eq.s32.totalorder %s26, 0
      %p93 = por %p91, %p92
      %p94 = scmp.ne.s32.totalorder %s86, %s88
      %p95 = scmp.eq.s32.totalorder %s31, 1
      %p96 = por %p94, %p95
      %p97 = scmp.ne.s32.totalorder %s88, %s89
      %p98 = scmp.eq.s32.totalorder %s31, 0
      %p99 = por %p97, %p98
      %p100 = scmp.ne.s32.totalorder %s88, %s89
      %p101 = scmp.eq.s32.totalorder %s32, 1
      %p102 = por %p100, %p101
      %p104 = scmp.ne.s32.totalorder %s89, %s103
      %p105 = scmp.eq.s32.totalorder %s32, 0
      %p106 = por %p104, %p105
      %s108 = sadd.s32 %s107, 1
      %p111 = scmp.eq.s32.totalorder %s26, 1
      %p112 = scmp.ne.s32.totalorder %s107, %s109
      %p113 = scmp.eq.s32.totalorder %s26, 0
      %p114 = por %p112, %p113
      %p115 = scmp.ne.s32.totalorder %s107, %s109
      %p116 = scmp.eq.s32.totalorder %s31, 1
      %p117 = por %p115, %p116
      %p118 = scmp.ne.s32.totalorder %s109, %s110
      %p119 = scmp.eq.s32.totalorder %s31, 0
      %p120 = por %p118, %p119
      %p121 = scmp.ne.s32.totalorder %s109, %s110
      %p122 = scmp.eq.s32.totalorder %s32, 1
      %p123 = por %p121, %p122
      %p125 = scmp.ne.s32.totalorder %s110, %s124
      %p126 = scmp.eq.s32.totalorder %s32, 0
      %p127 = por %p125, %p126
      %s129 = sadd.s32 %s128, 1
      %p132 = scmp.eq.s32.totalorder %s26, 1
      %p133 = scmp.ne.s32.totalorder %s128, %s130
      %p134 = scmp.eq.s32.totalorder %s26, 0
      %p135 = por %p133, %p134
      %p136 = scmp.ne.s32.totalorder %s128, %s130
      %p137 = scmp.eq.s32.totalorder %s31, 1
      %p138 = por %p136, %p137
      %p139 = scmp.ne.s32.totalorder %s130, %s131
      %p140 = scmp.eq.s32.totalorder %s31, 0
      %p141 = por %p139, %p140
      %p142 = scmp.ne.s32.totalorder %s130, %s131
      %p143 = scmp.eq.s32.totalorder %s32, 1
      %p144 = por %p142, %p143
      %p146 = scmp.ne.s32.totalorder %s131, %s145
      %p147 = scmp.eq.s32.totalorder %s32, 0
      %p148 = por %p146, %p147
      %s150 = sadd.s32 %s149, 1
      %p153 = scmp.eq.s32.totalorder %s26, 1
      %p154 = scmp.ne.s32.totalorder %s149, %s151
      %p155 = scmp.eq.s32.totalorder %s26, 0
      %p156 = por %p154, %p155
      %p157 = scmp.ne.s32.totalorder %s149, %s151
      %p158 = scmp.eq.s32.totalorder %s31, 1
      %p159 = por %p157, %p158
      %p160 = scmp.ne.s32.totalorder %s151, %s152
      %p161 = scmp.eq.s32.totalorder %s31, 0
      %p162 = por %p160, %p161
      %p163 = scmp.ne.s32.totalorder %s151, %s152
      %p164 = scmp.eq.s32.totalorder %s32, 1
      %p165 = por %p163, %p164
      %p167 = scmp.ne.s32.totalorder %s152, %s166
      %p168 = scmp.eq.s32.totalorder %s32, 0
      %p169 = por %p167, %p168
      %s171 = sadd.s32 %s170, 1
      %p174 = scmp.eq.s32.totalorder %s26, 1
      %p175 = scmp.ne.s32.totalorder %s170, %s172
      %p176 = scmp.eq.s32.totalorder %s26, 0
      %p177 = por %p175, %p176
      %p178 = scmp.ne.s32.totalorder %s170, %s172
      %p179 = scmp.eq.s32.totalorder %s31, 1
      %p180 = por %p178, %p179
      %p181 = scmp.ne.s32.totalorder %s172, %s173
      %p182 = scmp.eq.s32.totalorder %s31, 0
      %p183 = por %p181, %p182
      %p184 = scmp.ne.s32.totalorder %s172, %s173
      %p185 = scmp.eq.s32.totalorder %s32, 1
      %p186 = por %p184, %p185
      %p188 = scmp.ne.s32.totalorder %s173, %s187
      %p189 = scmp.eq.s32.totalorder %s32, 0
      %p190 = por %p188, %p189
      %s192 = sadd.s32 %s191, 1
      %p195 = scmp.eq.s32.totalorder %s26, 1
      %p196 = scmp.ne.s32.totalorder %s191, %s193
      %p197 = scmp.eq.s32.totalorder %s26, 0
      %p198 = por %p196, %p197
      %p199 = scmp.ne.s32.totalorder %s191, %s193
      %p200 = scmp.eq.s32.totalorder %s31, 1
      %p201 = por %p199, %p200
      %p202 = scmp.ne.s32.totalorder %s193, %s194
      %p203 = scmp.eq.s32.totalorder %s31, 0
      %p204 = por %p202, %p203
      %p205 = scmp.ne.s32.totalorder %s193, %s194
      %p206 = scmp.eq.s32.totalorder %s32, 1
      %p207 = por %p205, %p206
      %p209 = scmp.ne.s32.totalorder %s194, %s208
      %p210 = scmp.eq.s32.totalorder %s32, 0
      %p211 = por %p209, %p210
      %s213 = sadd.s32 %s212, 1
      %p216 = scmp.eq.s32.totalorder %s26, 1
      %p217 = scmp.ne.s32.totalorder %s212, %s214
      %p218 = scmp.eq.s32.totalorder %s26, 0
      %p219 = por %p217, %p218
      %p220 = scmp.ne.s32.totalorder %s212, %s214
      %p221 = scmp.eq.s32.totalorder %s31, 1
      %p222 = por %p220, %p221
      %p223 = scmp.ne.s32.totalorder %s214, %s215
      %p224 = scmp.eq.s32.totalorder %s31, 0
      %p225 = por %p223, %p224
      %p226 = scmp.ne.s32.totalorder %s214, %s215
      %p227 = scmp.eq.s32.totalorder %s32, 1
      %p228 = por %p226, %p227
      %p230 = scmp.ne.s32.totalorder %s215, %s229
      %p231 = scmp.eq.s32.totalorder %s32, 0
      %p232 = por %p230, %p231
      %s234 = sadd.s32 %s233, 1
      %p237 = scmp.eq.s32.totalorder %s26, 1
      %p238 = scmp.ne.s32.totalorder %s233, %s235
      %p239 = scmp.eq.s32.totalorder %s26, 0
      %p240 = por %p238, %p239
      %p241 = scmp.ne.s32.totalorder %s233, %s235
      %p242 = scmp.eq.s32.totalorder %s31, 1
      %p243 = por %p241, %p242
      %p244 = scmp.ne.s32.totalorder %s235, %s236
      %p245 = scmp.eq.s32.totalorder %s31, 0
      %p246 = por %p244, %p245
      %p247 = scmp.ne.s32.totalorder %s235, %s236
      %p248 = scmp.eq.s32.totalorder %s32, 1
      %p249 = por %p247, %p248
      %p251 = scmp.ne.s32.totalorder %s236, %s250
      %p252 = scmp.eq.s32.totalorder %s32, 0
      %p253 = por %p251, %p252
      %s255 = sadd.s32 %s254, 1
      %p258 = scmp.eq.s32.totalorder %s26, 1
      %p259 = scmp.ne.s32.totalorder %s254, %s256
      %p260 = scmp.eq.s32.totalorder %s26, 0
      %p261 = por %p259, %p260
      %p262 = scmp.ne.s32.totalorder %s254, %s256
      %p263 = scmp.eq.s32.totalorder %s31, 1
      %p264 = por %p262, %p263
      %p265 = scmp.ne.s32.totalorder %s256, %s257
      %p266 = scmp.eq.s32.totalorder %s31, 0
      %p267 = por %p265, %p266
      %p268 = scmp.ne.s32.totalorder %s256, %s257
      %p269 = scmp.eq.s32.totalorder %s32, 1
      %p270 = por %p268, %p269
      %p272 = scmp.ne.s32.totalorder %s257, %s271
      %p273 = scmp.eq.s32.totalorder %s32, 0
      %p274 = por %p272, %p273
      %s276 = sadd.s32 %s275, 1
      %p279 = scmp.eq.s32.totalorder %s26, 1
      %p280 = scmp.ne.s32.totalorder %s275, %s277
      %p281 = scmp.eq.s32.totalorder %s26, 0
      %p282 = por %p280, %p281
      %p283 = scmp.ne.s32.totalorder %s275, %s277
      %p284 = scmp.eq.s32.totalorder %s31, 1
      %p285 = por %p283, %p284
      %p286 = scmp.ne.s32.totalorder %s277, %s278
      %p287 = scmp.eq.s32.totalorder %s31, 0
      %p288 = por %p286, %p287
      %p289 = scmp.ne.s32.totalorder %s277, %s278
      %p290 = scmp.eq.s32.totalorder %s32, 1
      %p291 = por %p289, %p290
      %p293 = scmp.ne.s32.totalorder %s278, %s292
      %p294 = scmp.eq.s32.totalorder %s32, 0
      %p295 = por %p293, %p294
      %s297 = sadd.s32 %s296, 1
      %p300 = scmp.eq.s32.totalorder %s26, 1
      %p301 = scmp.ne.s32.totalorder %s296, %s298
      %p302 = scmp.eq.s32.totalorder %s26, 0
      %p303 = por %p301, %p302
      %p304 = scmp.ne.s32.totalorder %s296, %s298
      %p305 = scmp.eq.s32.totalorder %s31, 1
      %p306 = por %p304, %p305
      %p307 = scmp.ne.s32.totalorder %s298, %s299
      %p308 = scmp.eq.s32.totalorder %s31, 0
      %p309 = por %p307, %p308
      %p310 = scmp.ne.s32.totalorder %s298, %s299
      %p311 = scmp.eq.s32.totalorder %s32, 1
      %p312 = por %p310, %p311
      %p314 = scmp.ne.s32.totalorder %s299, %s313
      %p315 = scmp.eq.s32.totalorder %s32, 0
      %p316 = por %p314, %p315
      %s318 = sadd.s32 %s317, 1
      %p321 = scmp.eq.s32.totalorder %s26, 1
      %p322 = scmp.ne.s32.totalorder %s317, %s319
      %p323 = scmp.eq.s32.totalorder %s26, 0
      %p324 = por %p322, %p323
      %p325 = scmp.ne.s32.totalorder %s317, %s319
      %p326 = scmp.eq.s32.totalorder %s31, 1
      %p327 = por %p325, %p326
      %p328 = scmp.ne.s32.totalorder %s319, %s320
      %p329 = scmp.eq.s32.totalorder %s31, 0
      %p330 = por %p328, %p329
      %p331 = scmp.ne.s32.totalorder %s319, %s320
      %p332 = scmp.eq.s32.totalorder %s32, 1
      %p333 = por %p331, %p332
      %p335 = scmp.ne.s32.totalorder %s320, %s334
      %p336 = scmp.eq.s32.totalorder %s32, 0
      %p337 = por %p335, %p336
      %s338 = ssub.s32 %s26, %s33
      %p339 = scmp.eq.s32.totalorder %s338, 0
      %s341 = sadd.s32 %s340, 1
      %s342 = scalar_select %p339, %s340, %s341
      %p345 = pneg %p339
      %p346 = scmp.eq.s32.totalorder %s26, 1
      %p347 = por %p345, %p346
      %p348 = scmp.ne.s32.totalorder %s340, %s343
      %p349 = scmp.eq.s32.totalorder %s26, 0
      %p350 = por %p348, %p349
      %p351 = scmp.ne.s32.totalorder %s340, %s343
      %p352 = scmp.eq.s32.totalorder %s31, 1
      %p353 = por %p351, %p352
      %p354 = scmp.ne.s32.totalorder %s343, %s344
      %p355 = scmp.eq.s32.totalorder %s31, 0
      %p356 = por %p354, %p355
      %p357 = scmp.ne.s32.totalorder %s343, %s344
      %p358 = scmp.eq.s32.totalorder %s32, 1
      %p359 = por %p357, %p358
      %p361 = scmp.ne.s32.totalorder %s344, %s360
      %p362 = scmp.eq.s32.totalorder %s32, 0
      %p363 = por %p361, %p362
      %p364 = scmp.le.s32.totalorder 1, %s26
      %p365 = scmp.lt.s32.totalorder %s26, 3
      %p366 = pnand %p364, %p365
      %p367 = pneg %p366
      // Predicated region
      $region9: #{tpu_custom_call.1} parent=5 // pred_check
        _
      $region10: #{tpu_custom_call.1} parent=5 // pred_check_branch
        %369 = sbr.rel (%p366) target = $region12
      $region11: #{tpu_custom_call.1} parent=5 // pred_region
        %s370 = ssub.s32 %s26, 1
        // Predicated region
        $region13: #{tpu_custom_call.1} parent=11 // pred_check
          %p371 = pneg %p99
        $region14: #{tpu_custom_call.1} parent=11 // pred_check_branch
          %373 = sbr.rel (%p371) target = $region16
        $region15: #{tpu_custom_call.1} parent=11 // pred_region
          %s375 = ssub.s32 2048, 2048
          %376 = vsyncadd [#allocation3], %s375
          %s377 = sshll.u32 [#allocation2], 4
          %s378 = int_to_ptr.vmem [resolvable:$true] %s377
          %383 = dma.hbm_to_vmem [thread:$0]  %s2, 2048, %s378, [#allocation3], 256, 256, 16
        $region16: #{tpu_custom_call.1} parent=11 // pred_fallthru
          _
        // Predicated region
        $region17: #{tpu_custom_call.1} parent=11 // pred_check
          %p384 = pneg %p120
        $region18: #{tpu_custom_call.1} parent=11 // pred_check_branch
          %386 = sbr.rel (%p384) target = $region20
        $region19: #{tpu_custom_call.1} parent=11 // pred_region
          %s388 = ssub.s32 512, 512
          %389 = vsyncadd [#allocation6], %s388
          %s390 = sshll.u32 [#allocation5], 4
          %s391 = int_to_ptr.vmem [resolvable:$true] %s390
          %396 = dma.hbm_to_vmem [thread:$0]  %s3, 512, %s391, [#allocation6], 256, 256, 16
        $region20: #{tpu_custom_call.1} parent=11 // pred_fallthru
          _
        // Predicated region
        $region21: #{tpu_custom_call.1} parent=11 // pred_check
          %p397 = pneg %p141
        $region22: #{tpu_custom_call.1} parent=11 // pred_check_branch
          %399 = sbr.rel (%p397) target = $region24
        $region23: #{tpu_custom_call.1} parent=11 // pred_region
          %s401 = ssub.s32 128, 128
          %402 = vsyncadd [#allocation6], %s401
          %s404 = sshll.u32 [#allocation7], 4
          %s405 = int_to_ptr.vmem [resolvable:$true] %s404
          %407 = dma.hbm_to_vmem [thread:$0]  %s4, 128, %s405, [#allocation6]
        $region24: #{tpu_custom_call.1} parent=11 // pred_fallthru
          _
        // Predicated region
        $region25: #{tpu_custom_call.1} parent=11 // pred_check
          %p408 = pneg %p162
        $region26: #{tpu_custom_call.1} parent=11 // pred_check_branch
          %410 = sbr.rel (%p408) target = $region28
        $region27: #{tpu_custom_call.1} parent=11 // pred_region
          _
        $region28: #{tpu_custom_call.1} parent=11 // pred_fallthru
          _
        // Predicated region
        $region29: #{tpu_custom_call.1} parent=11 // pred_check
          %p411 = pneg %p183
        $region30: #{tpu_custom_call.1} parent=11 // pred_check_branch
          %413 = sbr.rel (%p411) target = $region32
        $region31: #{tpu_custom_call.1} parent=11 // pred_region
          %s415 = ssub.s32 128, 128
          %416 = vsyncadd [#allocation9], %s415
          %s418 = sshll.u32 [#allocation8], 4
          %s419 = int_to_ptr.vmem [resolvable:$true] %s418
          %421 = dma.hbm_to_vmem [thread:$0]  %s6, 128, %s419, [#allocation9]
        $region32: #{tpu_custom_call.1} parent=11 // pred_fallthru
          _
        // Predicated region
        $region33: #{tpu_custom_call.1} parent=11 // pred_check
          %p422 = pneg %p204
        $region34: #{tpu_custom_call.1} parent=11 // pred_check_branch
          %424 = sbr.rel (%p422) target = $region36
        $region35: #{tpu_custom_call.1} parent=11 // pred_region
          _
        $region36: #{tpu_custom_call.1} parent=11 // pred_fallthru
          _
        // Predicated region
        $region37: #{tpu_custom_call.1} parent=11 // pred_check
          %p425 = pneg %p225
        $region38: #{tpu_custom_call.1} parent=11 // pred_check_branch
          %427 = sbr.rel (%p425) target = $region40
        $region39: #{tpu_custom_call.1} parent=11 // pred_region
          _
        $region40: #{tpu_custom_call.1} parent=11 // pred_fallthru
          _
        // Predicated region
        $region41: #{tpu_custom_call.1} parent=11 // pred_check
          %p428 = pneg %p246
        $region42: #{tpu_custom_call.1} parent=11 // pred_check_branch
          %430 = sbr.rel (%p428) target = $region44
        $region43: #{tpu_custom_call.1} parent=11 // pred_region
          _
        $region44: #{tpu_custom_call.1} parent=11 // pred_fallthru
          _
        // Predicated region
        $region45: #{tpu_custom_call.1} parent=11 // pred_check
          %p431 = pneg %p267
        $region46: #{tpu_custom_call.1} parent=11 // pred_check_branch
          %433 = sbr.rel (%p431) target = $region48
        $region47: #{tpu_custom_call.1} parent=11 // pred_region
          _
        $region48: #{tpu_custom_call.1} parent=11 // pred_fallthru
          _
        // Predicated region
        $region49: #{tpu_custom_call.1} parent=11 // pred_check
          %p434 = pneg %p288
        $region50: #{tpu_custom_call.1} parent=11 // pred_check_branch
          %436 = sbr.rel (%p434) target = $region52
        $region51: #{tpu_custom_call.1} parent=11 // pred_region
          _
        $region52: #{tpu_custom_call.1} parent=11 // pred_fallthru
          _
        // Predicated region
        $region53: #{tpu_custom_call.1} parent=11 // pred_check
          %p437 = pneg %p309
        $region54: #{tpu_custom_call.1} parent=11 // pred_check_branch
          %439 = sbr.rel (%p437) target = $region56
        $region55: #{tpu_custom_call.1} parent=11 // pred_region
          _
        $region56: #{tpu_custom_call.1} parent=11 // pred_fallthru
          _
        // Predicated region
        $region57: #{tpu_custom_call.1} parent=11 // pred_check
          %p440 = pneg %p330
        $region58: #{tpu_custom_call.1} parent=11 // pred_check_branch
          %442 = sbr.rel (%p440) target = $region60
        $region59: #{tpu_custom_call.1} parent=11 // pred_region
          _
        $region60: #{tpu_custom_call.1} parent=11 // pred_fallthru
          _
      $region12: #{tpu_custom_call.1} parent=5 // pred_fallthru
        _
      %p443 = scmp.lt.s32.totalorder %s26, 2
      // Predicated region
      $region61: #{tpu_custom_call.1} parent=5 // pred_check
        %p444 = pneg %p443
      $region62: #{tpu_custom_call.1} parent=5 // pred_check_branch
        %446 = sbr.rel (%p444) target = $region64
      $region63: #{tpu_custom_call.1} parent=5 // pred_region
        // Predicated region
        $region65: #{tpu_custom_call.1} parent=63 // pred_check
          %p447 = pneg %p46
        $region66: #{tpu_custom_call.1} parent=63 // pred_check_branch
          %449 = sbr.rel (%p447) target = $region68
        $region67: #{tpu_custom_call.1} parent=63 // pred_region
          %p450 = scmp.lt.s32.totalorder %s26, 1
          %s451 = scalar_select %p450, %s26, 1
          %s452 = smul.addr %s451, 8
          %s453 = scalar_lea.vmem %s0, %s452
        $region68: #{tpu_custom_call.1} parent=63 // pred_fallthru
          _
        // Predicated region
        $region69: #{tpu_custom_call.1} parent=63 // pred_check
          %p454 = pneg %p72
        $region70: #{tpu_custom_call.1} parent=63 // pred_check_branch
          %456 = sbr.rel (%p454) target = $region72
        $region71: #{tpu_custom_call.1} parent=63 // pred_region
          %p457 = scmp.lt.s32.totalorder %s26, 1
          %s458 = scalar_select %p457, %s26, 1
          %s459 = smul.addr %s458, 2
          %s460 = smul.addr %s459, 8
          %s461 = scalar_lea.vmem %s1, %s460
        $region72: #{tpu_custom_call.1} parent=63 // pred_fallthru
          _
      $region64: #{tpu_custom_call.1} parent=5 // pred_fallthru
        _
      %p462 = scmp.le.s32.totalorder 1, %s26
      %p463 = scmp.lt.s32.totalorder %s26, 3
      %p464 = pnand %p462, %p463
      %p465 = pneg %p464
      // Predicated region
      $region73: #{tpu_custom_call.1} parent=5 // pred_check
        _
      $region74: #{tpu_custom_call.1} parent=5 // pred_check_branch
        %467 = sbr.rel (%p464) target = $region76
      $region75: #{tpu_custom_call.1} parent=5 // pred_region
        %s468 = ssub.s32 %s26, 1
        // Predicated region
        $region77: #{tpu_custom_call.1} parent=75 // pred_check
          %p469 = pneg %p99
        $region78: #{tpu_custom_call.1} parent=75 // pred_check_branch
          %471 = sbr.rel (%p469) target = $region80
        $region79: #{tpu_custom_call.1} parent=75 // pred_region
          %472 = dma.done [#allocation3], 2048
        $region80: #{tpu_custom_call.1} parent=75 // pred_fallthru
          _
        // Predicated region
        $region81: #{tpu_custom_call.1} parent=75 // pred_check
          %p473 = pneg %p120
        $region82: #{tpu_custom_call.1} parent=75 // pred_check_branch
          %475 = sbr.rel (%p473) target = $region84
        $region83: #{tpu_custom_call.1} parent=75 // pred_region
          %476 = dma.done [#allocation6], 512
        $region84: #{tpu_custom_call.1} parent=75 // pred_fallthru
          _
        // Predicated region
        $region85: #{tpu_custom_call.1} parent=75 // pred_check
          %p477 = pneg %p141
        $region86: #{tpu_custom_call.1} parent=75 // pred_check_branch
          %479 = sbr.rel (%p477) target = $region88
        $region87: #{tpu_custom_call.1} parent=75 // pred_region
          %480 = dma.done [#allocation6], 128
        $region88: #{tpu_custom_call.1} parent=75 // pred_fallthru
          _
        // Predicated region
        $region89: #{tpu_custom_call.1} parent=75 // pred_check
          %p481 = pneg %p183
        $region90: #{tpu_custom_call.1} parent=75 // pred_check_branch
          %483 = sbr.rel (%p481) target = $region92
        $region91: #{tpu_custom_call.1} parent=75 // pred_region
          %484 = dma.done [#allocation9], 128
        $region92: #{tpu_custom_call.1} parent=75 // pred_fallthru
          _
        %p485 = scmp.lt.s32.totalorder %s31, 1
        %s486 = scalar_select %p485, %s31, 1
        %s487 = smul.addr %s486, 8
        %s488 = scalar_lea.vmem %s0, %s487
        %p489 = pneg %p52
        %p490 = pneg %p49
        %p491 = scmp.lt.s32.totalorder %s31, 1
        %s492 = scalar_select %p491, %s31, 1
        %s493 = smul.addr %s492, 2
        %s494 = smul.addr %s493, 8
        %s495 = scalar_lea.vmem %s1, %s494
        %p496 = pneg %p78
        %p497 = pneg %p75
        %p498 = pneg %p99
        %p499 = pneg %p96
        %p500 = pneg %p120
        %p501 = pneg %p117
        %p502 = pneg %p141
        %p503 = pneg %p138
        %p504 = pneg %p162
        %p505 = pneg %p159
        %p506 = pneg %p183
        %p507 = pneg %p180
        %p508 = pneg %p204
        %p509 = pneg %p201
        %p510 = pneg %p225
        %p511 = pneg %p222
        %p512 = pneg %p246
        %p513 = pneg %p243
        %p514 = pneg %p267
        %p515 = pneg %p264
        %p516 = pneg %p288
        %p517 = pneg %p285
        %p518 = pneg %p309
        %p519 = pneg %p306
        %p520 = pneg %p330
        %p521 = pneg %p327
        %p522 = pneg %p356
        %p523 = pneg %p353
        %s524 = sand.u32 %s343, 1
        %s525 = scalar_lea.sflag [#allocation4], %s524
        %s526 = sand.u32 %s343, 1
        %s527 = smul.addr %s526, 16
        %s528 = scalar_lea.vmem [#allocation10], %s527
        %p529 = scmp.lt.s32.totalorder %s31, 1
        %s530 = scalar_select %p529, %s31, 1
        %s531 = smul.addr %s530, 8
        %s532 = scalar_lea.vmem %s0, %s531
        %p533 = scmp.lt.s32.totalorder %s31, 1
        %s534 = scalar_select %p533, %s31, 1
        %s535 = smul.addr %s534, 2
        %s536 = smul.addr %s535, 8
        %s537 = scalar_lea.vmem %s1, %s536
        %v539 = vld [vmem:[%s532] sm:$0xff]
        %v540 = vld [vmem:[%s537] sm:$0xff]
        %v541 = vld [vmem:[%s537 + $0x8] sm:$0xff]
        %v542 = vld [vmem:[#allocation2] sm:$0xff]
        %v543 = vld [vmem:[#allocation2 + $0x8] sm:$0xff]
        %v544 = vld [vmem:[#allocation2 + $0x10] sm:$0xff]
        %v545 = vld [vmem:[#allocation2 + $0x18] sm:$0xff]
        %v546 = vld [vmem:[#allocation2 + $0x20] sm:$0xff]
        %v547 = vld [vmem:[#allocation2 + $0x28] sm:$0xff]
        %v548 = vld [vmem:[#allocation2 + $0x30] sm:$0xff]
        %v549 = vld [vmem:[#allocation2 + $0x38] sm:$0xff]
        %v550 = vld [vmem:[#allocation2 + $0x40] sm:$0xff]
        %v551 = vld [vmem:[#allocation2 + $0x48] sm:$0xff]
        %v552 = vld [vmem:[#allocation2 + $0x50] sm:$0xff]
        %v553 = vld [vmem:[#allocation2 + $0x58] sm:$0xff]
        %v554 = vld [vmem:[#allocation2 + $0x60] sm:$0xff]
        %v555 = vld [vmem:[#allocation2 + $0x68] sm:$0xff]
        %v556 = vld [vmem:[#allocation2 + $0x70] sm:$0xff]
        %v557 = vld [vmem:[#allocation2 + $0x78] sm:$0xff]
        %vm558 = vcmask 523264
        %v560 = vsel %vm558, %v539, 0
        %562 = vmatprep.subr.mxu0 %v543
        %563 = vmatpush1.msra.mxu0 %v542
        %564 = vmatprep.subr.mxu0 %v545
        %565 = vmatpush1.msra.mxu0 %v544
        %566 = vmatprep.subr.mxu0 %v547
        %567 = vmatpush1.msra.mxu0 %v546
        %568 = vmatprep.subr.mxu0 %v549
        %569 = vmatpush1.msra.mxu0 %v548
        %570 = vmatprep.subr.mxu0 %v551
        %571 = vmatpush1.msra.mxu0 %v550
        %572 = vmatprep.subr.mxu0 %v553
        %573 = vmatpush1.msra.mxu0 %v552
        %574 = vmatprep.subr.mxu0 %v555
        %575 = vmatpush1.msra.mxu0 %v554
        %576 = vmatprep.subr.mxu0 %v557
        %577 = vmatpush1.msra.mxu0 %v556
        %578 = vmatprep.subr.mxu0 0.0
        %579 = vmatpush1.msra.mxu0 0.0
        %580 = vmatprep.subr.mxu0 0.0
        %581 = vmatpush1.msra.mxu0 0.0
        %582 = vmatprep.subr.mxu0 0.0
        %583 = vmatpush1.msra.mxu0 0.0
        %584 = vmatprep.subr.mxu0 0.0
        %585 = vmatpush1.msra.mxu0 0.0
        %586 = vmatprep.subr.mxu0 0.0
        %587 = vmatpush1.msra.mxu0 0.0
        %588 = vmatprep.subr.mxu0 0.0
        %589 = vmatpush1.msra.mxu0 0.0
        %590 = vmatprep.subr.mxu0 0.0
        %591 = vmatpush1.msra.mxu0 0.0
        %592 = vmatprep.subr.mxu0 0.0
        %593 = vmatpush1.msra.mxu0 0.0
        %594 = vmatprep.subr.mxu0 0.0
        %595 = vmatpush1.msra.mxu0 0.0
        %596 = vmatprep.subr.mxu0 0.0
        %597 = vmatpush1.msra.mxu0 0.0
        %598 = vmatprep.subr.mxu0 0.0
        %599 = vmatpush1.msra.mxu0 0.0
        %600 = vmatprep.subr.mxu0 0.0
        %601 = vmatpush1.msra.mxu0 0.0
        %602 = vmatprep.subr.mxu0 0.0
        %603 = vmatpush1.msra.mxu0 0.0
        %604 = vmatprep.subr.mxu0 0.0
        %605 = vmatpush1.msra.mxu0 0.0
        %606 = vmatprep.subr.mxu0 0.0
        %607 = vmatpush1.msra.mxu0 0.0
        %608 = vmatprep.subr.mxu0 0.0
        %609 = vmatpush1.msra.mxu0 0.0
        %610 = vmatprep.subr.mxu0 0.0
        %611 = vmatpush1.msra.mxu0 0.0
        %612 = vmatprep.subr.mxu0 0.0
        %613 = vmatpush1.msra.mxu0 0.0
        %614 = vmatprep.subr.mxu0 0.0
        %615 = vmatpush1.msra.mxu0 0.0
        %616 = vmatprep.subr.mxu0 0.0
        %617 = vmatpush1.msra.mxu0 0.0
        %618 = vmatprep.subr.mxu0 0.0
        %619 = vmatpush1.msra.mxu0 0.0
        %620 = vmatprep.subr.mxu0 0.0
        %621 = vmatpush1.msra.mxu0 0.0
        %622 = vmatprep.subr.mxu0 0.0
        %623 = vmatpush1.msra.mxu0 0.0
        %624 = vmatprep.subr.mxu0 0.0
        %625 = vmatpush1.msra.mxu0 0.0
        %626 = vmatprep.mubr.f32.mxu0 0.0
        %627 = vmatmul.mubr.f32.gmra.mrb[0].mxu0 %v560
        %v628 = vpop.f32.mrb[0].mxu0
        %v629 = vadd.f32 0.0, %v628
        %v630 = vpop.f32.mrb[0].mxu0
        %v631 = vadd.f32 0.0, %v630
        %632 = vdwg.mxu0
        %v633 = vld [vmem:[#allocation7] sm:$0xff]
        %v634 = vld [vmem:[%s5] sm:$0xff]
        %636 = vset.pattern.permute.xlu0 0
        %637 = vperm.xlu0 %636, %v634
        %v638 = vpop.permute.xlu0 %637
        %vm640 = vcmask 64512
        %v642 = vsel %vm640, %v633, 0
        %644 = vmatprep.subr.mxu0 %v631
        %645 = vmatpush1.msra.mxu0 %v629
        %646 = vmatprep.subr.mxu0 0.0
        %647 = vmatpush1.msra.mxu0 0.0
        %648 = vmatprep.subr.mxu0 0.0
        %649 = vmatpush1.msra.mxu0 0.0
        %650 = vmatprep.subr.mxu0 0.0
        %651 = vmatpush1.msra.mxu0 0.0
        %652 = vmatprep.subr.mxu0 0.0
        %653 = vmatpush1.msra.mxu0 0.0
        %654 = vmatprep.subr.mxu0 0.0
        %655 = vmatpush1.msra.mxu0 0.0
        %656 = vmatprep.subr.mxu0 0.0
        %657 = vmatpush1.msra.mxu0 0.0
        %658 = vmatprep.subr.mxu0 0.0
        %659 = vmatpush1.msra.mxu0 0.0
        %660 = vmatprep.subr.mxu0 0.0
        %661 = vmatpush1.msra.mxu0 0.0
        %662 = vmatprep.subr.mxu0 0.0
        %663 = vmatpush1.msra.mxu0 0.0
        %664 = vmatprep.subr.mxu0 0.0
        %665 = vmatpush1.msra.mxu0 0.0
        %666 = vmatprep.subr.mxu0 0.0
        %667 = vmatpush1.msra.mxu0 0.0
        %668 = vmatprep.subr.mxu0 0.0
        %669 = vmatpush1.msra.mxu0 0.0
        %670 = vmatprep.subr.mxu0 0.0
        %671 = vmatpush1.msra.mxu0 0.0
        %672 = vmatprep.subr.mxu0 0.0
        %673 = vmatpush1.msra.mxu0 0.0
        %674 = vmatprep.subr.mxu0 0.0
        %675 = vmatpush1.msra.mxu0 0.0
        %676 = vmatprep.subr.mxu0 0.0
        %677 = vmatpush1.msra.mxu0 0.0
        %678 = vmatprep.subr.mxu0 0.0
        %679 = vmatpush1.msra.mxu0 0.0
        %680 = vmatprep.subr.mxu0 0.0
        %681 = vmatpush1.msra.mxu0 0.0
        %682 = vmatprep.subr.mxu0 0.0
        %683 = vmatpush1.msra.mxu0 0.0
        %684 = vmatprep.subr.mxu0 0.0
        %685 = vmatpush1.msra.mxu0 0.0
        %686 = vmatprep.subr.mxu0 0.0
        %687 = vmatpush1.msra.mxu0 0.0
        %688 = vmatprep.subr.mxu0 0.0
        %689 = vmatpush1.msra.mxu0 0.0
        %690 = vmatprep.subr.mxu0 0.0
        %691 = vmatpush1.msra.mxu0 0.0
        %692 = vmatprep.subr.mxu0 0.0
        %693 = vmatpush1.msra.mxu0 0.0
        %694 = vmatprep.subr.mxu0 0.0
        %695 = vmatpush1.msra.mxu0 0.0
        %696 = vmatprep.subr.mxu0 0.0
        %697 = vmatpush1.msra.mxu0 0.0
        %698 = vmatprep.subr.mxu0 0.0
        %699 = vmatpush1.msra.mxu0 0.0
        %700 = vmatprep.subr.mxu0 0.0
        %701 = vmatpush1.msra.mxu0 0.0
        %702 = vmatprep.subr.mxu0 0.0
        %703 = vmatpush1.msra.mxu0 0.0
        %704 = vmatprep.subr.mxu0 0.0
        %705 = vmatpush1.msra.mxu0 0.0
        %706 = vmatprep.subr.mxu0 0.0
        %707 = vmatpush1.msra.mxu0 0.0
        %708 = vmatprep.mubr.f32.mxu0 0.0
        %709 = vmatmul.mubr.f32.gmra.mrb[0].mxu0 %v642
        %v710 = vpop.f32.mrb[0].mxu0
        %v711 = vadd.f32 %v638, %v710
        %v712 = vpop.f32.mrb[0].mxu0
        %v713 = vadd.f32 %v638, %v712
        %714 = vdwg.mxu0
        %v715 = vld [vmem:[#allocation8] sm:$0xff]
        %v716 = vld [vmem:[%s7] sm:$0xff]
        %718 = vset.pattern.permute.xlu0 0
        %719 = vperm.xlu0 %718, %v716
        %v720 = vpop.permute.xlu0 %719
        %v723 = vsel %vm640, %v715, 0
        %725 = vmatprep.subr.mxu0 %v541
        %726 = vmatpush1.msra.mxu0 %v540
        %727 = vmatprep.subr.mxu0 0.0
        %728 = vmatpush1.msra.mxu0 0.0
        %729 = vmatprep.subr.mxu0 0.0
        %730 = vmatpush1.msra.mxu0 0.0
        %731 = vmatprep.subr.mxu0 0.0
        %732 = vmatpush1.msra.mxu0 0.0
        %733 = vmatprep.subr.mxu0 0.0
        %734 = vmatpush1.msra.mxu0 0.0
        %735 = vmatprep.subr.mxu0 0.0
        %736 = vmatpush1.msra.mxu0 0.0
        %737 = vmatprep.subr.mxu0 0.0
        %738 = vmatpush1.msra.mxu0 0.0
        %739 = vmatprep.subr.mxu0 0.0
        %740 = vmatpush1.msra.mxu0 0.0
        %741 = vmatprep.subr.mxu0 0.0
        %742 = vmatpush1.msra.mxu0 0.0
        %743 = vmatprep.subr.mxu0 0.0
        %744 = vmatpush1.msra.mxu0 0.0
        %745 = vmatprep.subr.mxu0 0.0
        %746 = vmatpush1.msra.mxu0 0.0
        %747 = vmatprep.subr.mxu0 0.0
        %748 = vmatpush1.msra.mxu0 0.0
        %749 = vmatprep.subr.mxu0 0.0
        %750 = vmatpush1.msra.mxu0 0.0
        %751 = vmatprep.subr.mxu0 0.0
        %752 = vmatpush1.msra.mxu0 0.0
        %753 = vmatprep.subr.mxu0 0.0
        %754 = vmatpush1.msra.mxu0 0.0
        %755 = vmatprep.subr.mxu0 0.0
        %756 = vmatpush1.msra.mxu0 0.0
        %757 = vmatprep.subr.mxu0 0.0
        %758 = vmatpush1.msra.mxu0 0.0
        %759 = vmatprep.subr.mxu0 0.0
        %760 = vmatpush1.msra.mxu0 0.0
        %761 = vmatprep.subr.mxu0 0.0
        %762 = vmatpush1.msra.mxu0 0.0
        %763 = vmatprep.subr.mxu0 0.0
        %764 = vmatpush1.msra.mxu0 0.0
        %765 = vmatprep.subr.mxu0 0.0
        %766 = vmatpush1.msra.mxu0 0.0
        %767 = vmatprep.subr.mxu0 0.0
        %768 = vmatpush1.msra.mxu0 0.0
        %769 = vmatprep.subr.mxu0 0.0
        %770 = vmatpush1.msra.mxu0 0.0
        %771 = vmatprep.subr.mxu0 0.0
        %772 = vmatpush1.msra.mxu0 0.0
        %773 = vmatprep.subr.mxu0 0.0
        %774 = vmatpush1.msra.mxu0 0.0
        %775 = vmatprep.subr.mxu0 0.0
        %776 = vmatpush1.msra.mxu0 0.0
        %777 = vmatprep.subr.mxu0 0.0
        %778 = vmatpush1.msra.mxu0 0.0
        %779 = vmatprep.subr.mxu0 0.0
        %780 = vmatpush1.msra.mxu0 0.0
        %781 = vmatprep.subr.mxu0 0.0
        %782 = vmatpush1.msra.mxu0 0.0
        %783 = vmatprep.subr.mxu0 0.0
        %784 = vmatpush1.msra.mxu0 0.0
        %785 = vmatprep.subr.mxu0 0.0
        %786 = vmatpush1.msra.mxu0 0.0
        %787 = vmatprep.subr.mxu0 0.0
        %788 = vmatpush1.msra.mxu0 0.0
        %789 = vmatprep.mubr.f32.mxu0 0.0
        %790 = vmatmul.mubr.f32.gmra.mrb[0].mxu0 %v723
        %v791 = vpop.f32.mrb[0].mxu0
        %v792 = vadd.f32 %v720, %v791
        %v793 = vpop.f32.mrb[0].mxu0
        %v794 = vadd.f32 %v720, %v793
        %795 = vdwg.mxu0
        %v796 = vadd.f32 %v711, %v792
        %v797 = vadd.f32 %v713, %v794
        %v798 = vmax.f32 %v796, 0.0
        %v799 = vmax.f32 %v797, 0.0
        %v800 = vld [vmem:[%s8] sm:$0xff]
        %v801 = vld [vmem:[%s9] sm:$0xff]
        %803 = vset.pattern.permute.xlu0 0
        %804 = vperm.xlu0 %803, %v801
        %v805 = vpop.permute.xlu0 %804
        %v808 = vsel %vm640, %v800, 0
        %810 = vmatprep.subr.mxu0 %v799
        %811 = vmatpush1.msra.mxu0 %v798
        %812 = vmatprep.subr.mxu0 0.0
        %813 = vmatpush1.msra.mxu0 0.0
        %814 = vmatprep.subr.mxu0 0.0
        %815 = vmatpush1.msra.mxu0 0.0
        %816 = vmatprep.subr.mxu0 0.0
        %817 = vmatpush1.msra.mxu0 0.0
        %818 = vmatprep.subr.mxu0 0.0
        %819 = vmatpush1.msra.mxu0 0.0
        %820 = vmatprep.subr.mxu0 0.0
        %821 = vmatpush1.msra.mxu0 0.0
        %822 = vmatprep.subr.mxu0 0.0
        %823 = vmatpush1.msra.mxu0 0.0
        %824 = vmatprep.subr.mxu0 0.0
        %825 = vmatpush1.msra.mxu0 0.0
        %826 = vmatprep.subr.mxu0 0.0
        %827 = vmatpush1.msra.mxu0 0.0
        %828 = vmatprep.subr.mxu0 0.0
        %829 = vmatpush1.msra.mxu0 0.0
        %830 = vmatprep.subr.mxu0 0.0
        %831 = vmatpush1.msra.mxu0 0.0
        %832 = vmatprep.subr.mxu0 0.0
        %833 = vmatpush1.msra.mxu0 0.0
        %834 = vmatprep.subr.mxu0 0.0
        %835 = vmatpush1.msra.mxu0 0.0
        %836 = vmatprep.subr.mxu0 0.0
        %837 = vmatpush1.msra.mxu0 0.0
        %838 = vmatprep.subr.mxu0 0.0
        %839 = vmatpush1.msra.mxu0 0.0
        %840 = vmatprep.subr.mxu0 0.0
        %841 = vmatpush1.msra.mxu0 0.0
        %842 = vmatprep.subr.mxu0 0.0
        %843 = vmatpush1.msra.mxu0 0.0
        %844 = vmatprep.subr.mxu0 0.0
        %845 = vmatpush1.msra.mxu0 0.0
        %846 = vmatprep.subr.mxu0 0.0
        %847 = vmatpush1.msra.mxu0 0.0
        %848 = vmatprep.subr.mxu0 0.0
        %849 = vmatpush1.msra.mxu0 0.0
        %850 = vmatprep.subr.mxu0 0.0
        %851 = vmatpush1.msra.mxu0 0.0
        %852 = vmatprep.subr.mxu0 0.0
        %853 = vmatpush1.msra.mxu0 0.0
        %854 = vmatprep.subr.mxu0 0.0
        %855 = vmatpush1.msra.mxu0 0.0
        %856 = vmatprep.subr.mxu0 0.0
        %857 = vmatpush1.msra.mxu0 0.0
        %858 = vmatprep.subr.mxu0 0.0
        %859 = vmatpush1.msra.mxu0 0.0
        %860 = vmatprep.subr.mxu0 0.0
        %861 = vmatpush1.msra.mxu0 0.0
        %862 = vmatprep.subr.mxu0 0.0
        %863 = vmatpush1.msra.mxu0 0.0
        %864 = vmatprep.subr.mxu0 0.0
        %865 = vmatpush1.msra.mxu0 0.0
        %866 = vmatprep.subr.mxu0 0.0
        %867 = vmatpush1.msra.mxu0 0.0
        %868 = vmatprep.subr.mxu0 0.0
        %869 = vmatpush1.msra.mxu0 0.0
        %870 = vmatprep.subr.mxu0 0.0
        %871 = vmatpush1.msra.mxu0 0.0
        %872 = vmatprep.subr.mxu0 0.0
        %873 = vmatpush1.msra.mxu0 0.0
        %874 = vmatprep.mubr.f32.mxu0 0.0
        %875 = vmatmul.mubr.f32.gmra.mrb[0].mxu0 %v808
        %v876 = vpop.f32.mrb[0].mxu0
        %v877 = vadd.f32 %v805, %v876
        %v878 = vpop.f32.mrb[0].mxu0
        %v879 = vadd.f32 %v805, %v878
        %880 = vdwg.mxu0
        %v881 = vxor.u32 %v877, 2147483648
        %v882 = vxor.u32 %v879, 2147483648
        %v883 = vmul.f32 %v881, 1.442695
        %v884 = vpow.pop %v883
        %v885 = vmul.f32 %v882, 1.442695
        %v886 = vpow.pop %v885
        %v887 = vadd.f32 %v884, 1.0
        %v888 = vadd.f32 %v886, 1.0
        %v889 = vrcp.pop %v887
        %v890 = vmul.f32 1.0, %v889
        %v891 = vrcp.pop %v888
        %v892 = vmul.f32 1.0, %v891
        %v893 = vmul.f32 %v540, %v890
        %v894 = vmul.f32 %v541, %v892
        %v895 = vld [vmem:[#allocation5] sm:$0xff]
        %v896 = vld [vmem:[#allocation5 + $0x8] sm:$0xff]
        %v897 = vld [vmem:[#allocation5 + $0x10] sm:$0x1]
        %v898 = vld [vmem:[#allocation5 + $0x18] sm:$0x1]
        %901 = vrot.lane.b32.xlu0 %v631, 17
        %v902 = vpop.permute.xlu0 %901
        %903 = vrot.lane.b32.xlu0 %v894, 17
        %v904 = vpop.permute.xlu0 %903
        %909 = vrot.lane.b32.xlu0 %v629, 17
        %v910 = vpop.permute.xlu0 %909
        %911 = vrot.lane.b32.xlu0 %v893, 17
        %v912 = vpop.permute.xlu0 %911
        %vm913 = vcmask 138240
        %v914 = vsel %vm913, %v910, %v902
        %v915 = vsel %vm913, %v912, %v904
        %v920 = vsel %vm913, %v902, %v910
        %v921 = vsel %vm913, %v904, %v912
        %v922 = vlaneseq
        %v923 = vshrl.u32 %v922, 7
        %v924 = vsub.s32 0, %v923
        %v925 = vrot.slane %v895, %v924
        %v926 = vlaneseq
        %v927 = vshrl.u32 %v926, 7
        %v928 = vsub.s32 0, %v927
        %v929 = vrot.slane %v896, %v928
        %v930 = vmul.f32 %v920, %v925
        %v931 = vmul.f32 %v914, %v929
        %v932 = vmul.f32 %v921, %v925
        %v933 = vmul.f32 %v915, %v929
        %934 = vrot.lane.b32.xlu0 %v631, 16
        %v935 = vpop.permute.xlu0 %934
        %936 = vrot.lane.b32.xlu0 %v894, 16
        %v937 = vpop.permute.xlu0 %936
        %940 = vrot.lane.b32.xlu0 %v629, 16
        %v941 = vpop.permute.xlu0 %940
        %942 = vrot.lane.b32.xlu0 %v893, 16
        %v943 = vpop.permute.xlu0 %942
        %vm944 = vcmask 130048
        %v945 = vsel %vm944, %v941, %v935
        %v946 = vsel %vm944, %v943, %v937
        %v951 = vsel %vm944, %v935, %v941
        %v952 = vsel %vm944, %v937, %v943
        %v953 = vlaneseq
        %v954 = vshrl.u32 %v953, 7
        %v955 = vsub.s32 1, %v954
        %v956 = vrot.slane %v895, %v955
        %v957 = vlaneseq
        %v958 = vshrl.u32 %v957, 7
        %v959 = vsub.s32 1, %v958
        %v960 = vrot.slane %v896, %v959
        %v961 = vmul.f32 %v951, %v956
        %v962 = vmul.f32 %v945, %v960
        %v963 = vmul.f32 %v952, %v956
        %v964 = vmul.f32 %v946, %v960
        %965 = vrot.lane.b32.xlu0 %v631, 15
        %v966 = vpop.permute.xlu0 %965
        %967 = vrot.lane.b32.xlu0 %v894, 15
        %v968 = vpop.permute.xlu0 %967
        %971 = vrot.lane.b32.xlu0 %v629, 15
        %v972 = vpop.permute.xlu0 %971
        %973 = vrot.lane.b32.xlu0 %v893, 15
        %v974 = vpop.permute.xlu0 %973
        %vm975 = vcmask 121856
        %v976 = vsel %vm975, %v972, %v966
        %v977 = vsel %vm975, %v974, %v968
        %v982 = vsel %vm975, %v966, %v972
        %v983 = vsel %vm975, %v968, %v974
        %v984 = vlaneseq
        %v985 = vshrl.u32 %v984, 7
        %v986 = vsub.s32 2, %v985
        %v987 = vrot.slane %v895, %v986
        %v988 = vlaneseq
        %v989 = vshrl.u32 %v988, 7
        %v990 = vsub.s32 2, %v989
        %v991 = vrot.slane %v896, %v990
        %v992 = vmul.f32 %v982, %v987
        %v993 = vmul.f32 %v976, %v991
        %v994 = vmul.f32 %v983, %v987
        %v995 = vmul.f32 %v977, %v991
        %996 = vrot.lane.b32.xlu0 %v631, 1
        %v997 = vpop.permute.xlu0 %996
        %998 = vrot.lane.b32.xlu0 %v894, 1
        %v999 = vpop.permute.xlu0 %998
        %1002 = vrot.lane.b32.xlu0 %v629, 1
        %v1003 = vpop.permute.xlu0 %1002
        %1004 = vrot.lane.b32.xlu0 %v893, 1
        %v1005 = vpop.permute.xlu0 %1004
        %vm1006 = vcmask 7168
        %v1007 = vsel %vm1006, %v1003, %v997
        %v1008 = vsel %vm1006, %v1005, %v999
        %v1013 = vsel %vm1006, %v997, %v1003
        %v1014 = vsel %vm1006, %v999, %v1005
        %v1015 = vlaneseq
        %v1016 = vshrl.u32 %v1015, 7
        %v1017 = vsub.s32 3, %v1016
        %v1018 = vrot.slane %v895, %v1017
        %v1019 = vlaneseq
        %v1020 = vshrl.u32 %v1019, 7
        %v1021 = vsub.s32 3, %v1020
        %v1022 = vrot.slane %v896, %v1021
        %v1023 = vmul.f32 %v1013, %v1018
        %v1024 = vmul.f32 %v1007, %v1022
        %v1025 = vmul.f32 %v1014, %v1018
        %v1026 = vmul.f32 %v1008, %v1022
        %v1027 = vlaneseq
        %v1028 = vshrl.u32 %v1027, 7
        %v1029 = vsub.s32 4, %v1028
        %v1030 = vrot.slane %v895, %v1029
        %v1031 = vlaneseq
        %v1032 = vshrl.u32 %v1031, 7
        %v1033 = vsub.s32 4, %v1032
        %v1034 = vrot.slane %v896, %v1033
        %v1035 = vmul.f32 %v629, %v1030
        %v1036 = vmul.f32 %v631, %v1034
        %v1037 = vmul.f32 %v893, %v1030
        %v1038 = vmul.f32 %v894, %v1034
        %1039 = vrot.lane.b32.xlu0 %v629, 127
        %v1040 = vpop.permute.xlu0 %1039
        %1041 = vrot.lane.b32.xlu0 %v631, 127
        %v1042 = vpop.permute.xlu0 %1041
        %1043 = vrot.lane.b32.xlu0 %v893, 127
        %v1044 = vpop.permute.xlu0 %1043
        %1045 = vrot.lane.b32.xlu0 %v894, 127
        %v1046 = vpop.permute.xlu0 %1045
        %vm1047 = vcmask 1039360
        %v1048 = vsel %vm1047, %v1040, %v1042
        %v1049 = vsel %vm1047, %v1044, %v1046
        %v1056 = vsel %vm1047, %v1042, %v1040
        %v1057 = vsel %vm1047, %v1046, %v1044
        %v1058 = vlaneseq
        %v1059 = vshrl.u32 %v1058, 7
        %v1060 = vsub.s32 5, %v1059
        %v1061 = vrot.slane %v895, %v1060
        %v1062 = vlaneseq
        %v1063 = vshrl.u32 %v1062, 7
        %v1064 = vsub.s32 5, %v1063
        %v1065 = vrot.slane %v896, %v1064
        %v1066 = vmul.f32 %v1048, %v1061
        %v1067 = vmul.f32 %v1056, %v1065
        %v1068 = vmul.f32 %v1049, %v1061
        %v1069 = vmul.f32 %v1057, %v1065
        %1070 = vrot.lane.b32.xlu0 %v629, 113
        %v1071 = vpop.permute.xlu0 %1070
        %1072 = vrot.lane.b32.xlu0 %v631, 113
        %v1073 = vpop.permute.xlu0 %1072
        %1074 = vrot.lane.b32.xlu0 %v893, 113
        %v1075 = vpop.permute.xlu0 %1074
        %1076 = vrot.lane.b32.xlu0 %v894, 113
        %v1077 = vpop.permute.xlu0 %1076
        %vm1078 = vcmask 924672
        %v1079 = vsel %vm1078, %v1071, %v1073
        %v1080 = vsel %vm1078, %v1075, %v1077
        %v1087 = vsel %vm1078, %v1073, %v1071
        %v1088 = vsel %vm1078, %v1077, %v1075
        %v1089 = vlaneseq
        %v1090 = vshrl.u32 %v1089, 7
        %v1091 = vsub.s32 6, %v1090
        %v1092 = vrot.slane %v895, %v1091
        %v1093 = vlaneseq
        %v1094 = vshrl.u32 %v1093, 7
        %v1095 = vsub.s32 6, %v1094
        %v1096 = vrot.slane %v896, %v1095
        %v1097 = vmul.f32 %v1079, %v1092
        %v1098 = vmul.f32 %v1087, %v1096
        %v1099 = vmul.f32 %v1080, %v1092
        %v1100 = vmul.f32 %v1088, %v1096
        %1101 = vrot.lane.b32.xlu0 %v629, 112
        %v1102 = vpop.permute.xlu0 %1101
        %1103 = vrot.lane.b32.xlu0 %v631, 112
        %v1104 = vpop.permute.xlu0 %1103
        %1105 = vrot.lane.b32.xlu0 %v893, 112
        %v1106 = vpop.permute.xlu0 %1105
        %1107 = vrot.lane.b32.xlu0 %v894, 112
        %v1108 = vpop.permute.xlu0 %1107
        %vm1109 = vcmask 916480
        %v1110 = vsel %vm1109, %v1102, %v1104
        %v1111 = vsel %vm1109, %v1106, %v1108
        %v1118 = vsel %vm1109, %v1104, %v1102
        %v1119 = vsel %vm1109, %v1108, %v1106
        %v1120 = vlaneseq
        %v1121 = vshrl.u32 %v1120, 7
        %v1122 = vsub.s32 7, %v1121
        %v1123 = vrot.slane %v895, %v1122
        %v1124 = vlaneseq
        %v1125 = vshrl.u32 %v1124, 7
        %v1126 = vsub.s32 7, %v1125
        %v1127 = vrot.slane %v896, %v1126
        %v1128 = vmul.f32 %v1110, %v1123
        %v1129 = vmul.f32 %v1118, %v1127
        %v1130 = vmul.f32 %v1111, %v1123
        %v1131 = vmul.f32 %v1119, %v1127
        %1132 = vrot.lane.b32.xlu0 %v629, 111
        %v1133 = vpop.permute.xlu0 %1132
        %1134 = vrot.lane.b32.xlu0 %v631, 111
        %v1135 = vpop.permute.xlu0 %1134
        %1136 = vrot.lane.b32.xlu0 %v893, 111
        %v1137 = vpop.permute.xlu0 %1136
        %1138 = vrot.lane.b32.xlu0 %v894, 111
        %v1139 = vpop.permute.xlu0 %1138
        %vm1140 = vcmask 908288
        %v1141 = vsel %vm1140, %v1133, %v1135
        %v1142 = vsel %vm1140, %v1137, %v1139
        %v1149 = vsel %vm1140, %v1135, %v1133
        %v1150 = vsel %vm1140, %v1139, %v1137
        %v1151 = vlaneseq
        %v1152 = vshrl.u32 %v1151, 7
        %v1153 = vsub.s32 0, %v1152
        %v1154 = vrot.slane %v897, %v1153
        %v1155 = vlaneseq
        %v1156 = vshrl.u32 %v1155, 7
        %v1157 = vsub.s32 0, %v1156
        %v1158 = vrot.slane %v898, %v1157
        %v1159 = vmul.f32 %v1141, %v1154
        %v1160 = vmul.f32 %v1149, %v1158
        %v1161 = vmul.f32 %v1142, %v1154
        %v1162 = vmul.f32 %v1150, %v1158
        %v1163 = vpack.c.bf16 %v932, %v930
        %v1164 = vpack.c.bf16 %v933, %v931
        %v1165 = vpack.c.bf16 %v963, %v961
        %v1166 = vpack.c.bf16 %v964, %v962
        %v1167 = vpack.c.bf16 %v994, %v992
        %v1168 = vpack.c.bf16 %v995, %v993
        %v1169 = vpack.c.bf16 %v1025, %v1023
        %v1170 = vpack.c.bf16 %v1026, %v1024
        %v1171 = vpack.c.bf16 %v1037, %v1035
        %v1172 = vpack.c.bf16 %v1038, %v1036
        %v1173 = vpack.c.bf16 %v1068, %v1066
        %v1174 = vpack.c.bf16 %v1069, %v1067
        %v1175 = vpack.c.bf16 %v1099, %v1097
        %v1176 = vpack.c.bf16 %v1100, %v1098
        %v1177 = vpack.c.bf16 %v1130, %v1128
        %v1178 = vpack.c.bf16 %v1131, %v1129
        %v1179 = vpack.c.bf16 %v1161, %v1159
        %v1180 = vpack.c.bf16 %v1162, %v1160
        %v1181 = vld [vmem:[%s10] sm:$0xff]
        %v1182 = vld [vmem:[%s10 + $0x8] sm:$0xff]
        %v1183 = vpack.c.bf16 %v1181, %v1181
        %v1184 = vpack.c.bf16 %v1182, %v1182
        %v1185 = vld [vmem:[%s11] sm:$0xff]
        %1187 = vset.pattern.permute.xlu0 0
        %1188 = vperm.xlu0 %1187, %v1185
        %v1189 = vpop.permute.xlu0 %1188
        %v1192 = vsel %vm944, %v1184, 0
        %1194 = vmatprep.subr.bf16.mxu0 %v1164
        %1195 = vmatpush1.bf16.msra.mxu0 %v1163
        %1196 = vmatprep.subr.bf16.mxu0 %v1166
        %1197 = vmatpush1.bf16.msra.mxu0 %v1165
        %1198 = vmatprep.subr.bf16.mxu0 %v1168
        %1199 = vmatpush1.bf16.msra.mxu0 %v1167
        %1200 = vmatprep.subr.bf16.mxu0 %v1170
        %1201 = vmatpush1.bf16.msra.mxu0 %v1169
        %1202 = vmatprep.subr.bf16.mxu0 %v1172
        %1203 = vmatpush1.bf16.msra.mxu0 %v1171
        %1204 = vmatprep.subr.bf16.mxu0 %v1174
        %1205 = vmatpush1.bf16.msra.mxu0 %v1173
        %1206 = vmatprep.subr.bf16.mxu0 %v1176
        %1207 = vmatpush1.bf16.msra.mxu0 %v1175
        %1208 = vmatprep.subr.bf16.mxu0 %v1178
        %1209 = vmatpush1.bf16.msra.mxu0 %v1177
        %1210 = vmatprep.subr.bf16.mxu0 %v1180
        %1211 = vmatpush1.bf16.msra.mxu0 %v1179
        %1212 = vmatprep.subr.bf16.mxu0 0
        %1213 = vmatpush1.bf16.msra.mxu0 0
        %1214 = vmatprep.subr.bf16.mxu0 0
        %1215 = vmatpush1.bf16.msra.mxu0 0
        %1216 = vmatprep.subr.bf16.mxu0 0
        %1217 = vmatpush1.bf16.msra.mxu0 0
        %1218 = vmatprep.subr.bf16.mxu0 0
        %1219 = vmatpush1.bf16.msra.mxu0 0
        %1220 = vmatprep.subr.bf16.mxu0 0
        %1221 = vmatpush1.bf16.msra.mxu0 0
        %1222 = vmatprep.subr.bf16.mxu0 0
        %1223 = vmatpush1.bf16.msra.mxu0 0
        %1224 = vmatprep.subr.bf16.mxu0 0
        %1225 = vmatpush1.bf16.msra.mxu0 0
        %1226 = vmatprep.mubr.bf16.mxu0 %v1192
        %1227 = vmatmul.mubr.bf16.gmra.mrb[0].mxu0 %v1183
        %v1228 = vpop.f32.mrb[0].mxu0
        %v1229 = vadd.f32 %v1189, %v1228
        %v1230 = vpop.f32.mrb[0].mxu0
        %v1231 = vadd.f32 %v1189, %v1230
        %v1232 = vpop.f32.mrb[0].mxu0
        %v1233 = vpop.f32.mrb[0].mxu0
        %1234 = vdwg.mxu0
        %v1235 = vmax.f32 %v1229, 0.0
        %v1236 = vmax.f32 %v1231, 0.0
        %1238 = vrot.lane.b32.xlu0 %v1236, 17
        %v1239 = vpop.permute.xlu0 %1238
        %1242 = vrot.lane.b32.xlu0 %v1235, 17
        %v1243 = vpop.permute.xlu0 %1242
        %v1244 = vsel %vm913, %v1243, %v1239
        %v1247 = vsel %vm913, %v1239, %v1243
        %v1248 = vmul.f32 %v1247, %v925
        %v1249 = vmul.f32 %v1244, %v929
        %1250 = vrot.lane.b32.xlu0 %v1236, 16
        %v1251 = vpop.permute.xlu0 %1250
        %1253 = vrot.lane.b32.xlu0 %v1235, 16
        %v1254 = vpop.permute.xlu0 %1253
        %v1255 = vsel %vm944, %v1254, %v1251
        %v1258 = vsel %vm944, %v1251, %v1254
        %v1259 = vmul.f32 %v1258, %v956
        %v1260 = vmul.f32 %v1255, %v960
        %1261 = vrot.lane.b32.xlu0 %v1236, 15
        %v1262 = vpop.permute.xlu0 %1261
        %1264 = vrot.lane.b32.xlu0 %v1235, 15
        %v1265 = vpop.permute.xlu0 %1264
        %v1266 = vsel %vm975, %v1265, %v1262
        %v1269 = vsel %vm975, %v1262, %v1265
        %v1270 = vmul.f32 %v1269, %v987
        %v1271 = vmul.f32 %v1266, %v991
        %1272 = vrot.lane.b32.xlu0 %v1236, 1
        %v1273 = vpop.permute.xlu0 %1272
        %1275 = vrot.lane.b32.xlu0 %v1235, 1
        %v1276 = vpop.permute.xlu0 %1275
        %v1277 = vsel %vm1006, %v1276, %v1273
        %v1280 = vsel %vm1006, %v1273, %v1276
        %v1281 = vmul.f32 %v1280, %v1018
        %v1282 = vmul.f32 %v1277, %v1022
        %v1283 = vmul.f32 %v1235, %v1030
        %v1284 = vmul.f32 %v1236, %v1034
        %1285 = vrot.lane.b32.xlu0 %v1235, 127
        %v1286 = vpop.permute.xlu0 %1285
        %1287 = vrot.lane.b32.xlu0 %v1236, 127
        %v1288 = vpop.permute.xlu0 %1287
        %v1289 = vsel %vm1047, %v1286, %v1288
        %v1293 = vsel %vm1047, %v1288, %v1286
        %v1294 = vmul.f32 %v1289, %v1061
        %v1295 = vmul.f32 %v1293, %v1065
        %1296 = vrot.lane.b32.xlu0 %v1235, 113
        %v1297 = vpop.permute.xlu0 %1296
        %1298 = vrot.lane.b32.xlu0 %v1236, 113
        %v1299 = vpop.permute.xlu0 %1298
        %v1300 = vsel %vm1078, %v1297, %v1299
        %v1304 = vsel %vm1078, %v1299, %v1297
        %v1305 = vmul.f32 %v1300, %v1092
        %v1306 = vmul.f32 %v1304, %v1096
        %1307 = vrot.lane.b32.xlu0 %v1235, 112
        %v1308 = vpop.permute.xlu0 %1307
        %1309 = vrot.lane.b32.xlu0 %v1236, 112
        %v1310 = vpop.permute.xlu0 %1309
        %v1311 = vsel %vm1109, %v1308, %v1310
        %v1315 = vsel %vm1109, %v1310, %v1308
        %v1316 = vmul.f32 %v1311, %v1123
        %v1317 = vmul.f32 %v1315, %v1127
        %1318 = vrot.lane.b32.xlu0 %v1235, 111
        %v1319 = vpop.permute.xlu0 %1318
        %1320 = vrot.lane.b32.xlu0 %v1236, 111
        %v1321 = vpop.permute.xlu0 %1320
        %v1322 = vsel %vm1140, %v1319, %v1321
        %v1326 = vsel %vm1140, %v1321, %v1319
        %v1327 = vmul.f32 %v1322, %v1154
        %v1328 = vmul.f32 %v1326, %v1158
        %v1329 = vpack.c.bf16 %v1259, %v1248
        %v1330 = vpack.c.bf16 %v1260, %v1249
        %v1331 = vpack.c.bf16 %v1281, %v1270
        %v1332 = vpack.c.bf16 %v1282, %v1271
        %v1333 = vpack.c.bf16 %v1294, %v1283
        %v1334 = vpack.c.bf16 %v1295, %v1284
        %v1335 = vpack.c.bf16 %v1316, %v1305
        %v1336 = vpack.c.bf16 %v1317, %v1306
        %v1337 = vpack.c.bf16 %v1327, %v1327
        %v1338 = vpack.c.bf16 %v1328, %v1328
        %v1339 = vld [vmem:[%s12] sm:$0xff]
        %v1340 = vpack.c.bf16 %v1339, %v1339
        %v1341 = vld [vmem:[%s13] sm:$0xff]
        %1343 = vset.pattern.permute.xlu0 0
        %1344 = vperm.xlu0 %1343, %v1341
        %v1345 = vpop.permute.xlu0 %1344
        %vm1347 = vcmask 588800
        %v1349 = vsel %vm1347, %v1340, 0
        %vm1351 = vcmask 1043456
        %v1353 = vsel %vm1351, %v1337, 0
        %v1356 = vsel %vm1351, %v1338, 0
        %1358 = vmatprep.subr.bf16.mxu0 %v1330
        %1359 = vmatpush1.bf16.msra.mxu0 %v1329
        %1360 = vmatprep.subr.bf16.mxu0 %v1332
        %1361 = vmatpush1.bf16.msra.mxu0 %v1331
        %1362 = vmatprep.subr.bf16.mxu0 %v1334
        %1363 = vmatpush1.bf16.msra.mxu0 %v1333
        %1364 = vmatprep.subr.bf16.mxu0 %v1336
        %1365 = vmatpush1.bf16.msra.mxu0 %v1335
        %1366 = vmatprep.subr.bf16.mxu0 %v1356
        %1367 = vmatpush1.bf16.msra.mxu0 %v1353
        %1368 = vmatprep.subr.bf16.mxu0 0
        %1369 = vmatpush1.bf16.msra.mxu0 0
        %1370 = vmatprep.subr.bf16.mxu0 0
        %1371 = vmatpush1.bf16.msra.mxu0 0
        %1372 = vmatprep.subr.bf16.mxu0 0
        %1373 = vmatpush1.bf16.msra.mxu0 0
        %1374 = vmatprep.subr.bf16.mxu0 0
        %1375 = vmatpush1.bf16.msra.mxu0 0
        %1376 = vmatprep.subr.bf16.mxu0 0
        %1377 = vmatpush1.bf16.msra.mxu0 0
        %1378 = vmatprep.subr.bf16.mxu0 0
        %1379 = vmatpush1.bf16.msra.mxu0 0
        %1380 = vmatprep.subr.bf16.mxu0 0
        %1381 = vmatpush1.bf16.msra.mxu0 0
        %1382 = vmatprep.subr.bf16.mxu0 0
        %1383 = vmatpush1.bf16.msra.mxu0 0
        %1384 = vmatprep.subr.bf16.mxu0 0
        %1385 = vmatpush1.bf16.msra.mxu0 0
        %1386 = vmatprep.subr.bf16.mxu0 0
        %1387 = vmatpush1.bf16.msra.mxu0 0
        %1388 = vmatprep.subr.bf16.mxu0 0
        %1389 = vmatpush1.bf16.msra.mxu0 0
        %1390 = vmatprep.mubr.bf16.mxu0 0
        %1391 = vmatmul.mubr.bf16.gmra.mrb[0].mxu0 %v1349
        %v1392 = vpop.f32.mrb[0].mxu0
        %v1393 = vadd.f32 %v1345, %v1392
        %v1394 = vpop.f32.mrb[0].mxu0
        %v1395 = vadd.f32 %v1345, %v1394
        %v1396 = vpop.f32.mrb[0].mxu0
        %v1397 = vpop.f32.mrb[0].mxu0
        %1398 = vdwg.mxu0
        %v1399 = vmax.f32 %v1393, 0.0
        %v1400 = vmax.f32 %v1395, 0.0
        %1401 = vst [vmem:[%s528] sm:$0xff] %v1399
        %1402 = vst [vmem:[%s528 + $0x8] sm:$0xff] %v1400
        %s1403 = sand.u32 %s343, 1
        %s1404 = scalar_lea.sflag [#allocation4], %s1403
        %s1405 = sand.u32 %s343, 1
        %s1406 = smul.addr %s1405, 16
        %s1407 = scalar_lea.vmem [#allocation10], %s1406
        // Predicated region
        $region93: #{tpu_custom_call.1} parent=75 // pred_check
          %p1408 = pneg %p353
        $region94: #{tpu_custom_call.1} parent=75 // pred_check_branch
          %1410 = sbr.rel (%p1408) target = $region96
        $region95: #{tpu_custom_call.1} parent=75 // pred_region
          %s1412 = ssub.s32 256, 256
          %1413 = vsyncadd %s1404, %s1412
          %s1414 = smul.addr %s31, 2
          %s1415 = smul.addr %s1414, 128
          %s1416 = scalar_lea.hbm %s14, %s1415
          %s1418 = sshll.u32 %s1407, 4
          %s1419 = int_to_ptr.vmem [resolvable:$true] %s1418
          %1421 = dma.vmem_to_hbm [thread:$0]  %s1419, 256, %s1416, %s1404
        $region96: #{tpu_custom_call.1} parent=75 // pred_fallthru
          _
      $region76: #{tpu_custom_call.1} parent=5 // pred_fallthru
        _
      %p1422 = scmp.le.s32.totalorder 2, %s26
      // Predicated region
      $region97: #{tpu_custom_call.1} parent=5 // pred_check
        %p1423 = pneg %p1422
      $region98: #{tpu_custom_call.1} parent=5 // pred_check_branch
        %1425 = sbr.rel (%p1423) target = $region100
      $region99: #{tpu_custom_call.1} parent=5 // pred_region
        %s1426 = ssub.s32 %s26, 2
        // Predicated region
        $region101: #{tpu_custom_call.1} parent=99 // pred_check
          %p1427 = pneg %p359
        $region102: #{tpu_custom_call.1} parent=99 // pred_check_branch
          %1429 = sbr.rel (%p1427) target = $region104
        $region103: #{tpu_custom_call.1} parent=99 // pred_region
          %s1430 = sand.u32 %s344, 1
          %s1431 = scalar_lea.sflag [#allocation4], %s1430
          %s1432 = sand.u32 %s344, 1
          %s1433 = smul.addr %s1432, 16
          %s1434 = scalar_lea.vmem [#allocation10], %s1433
          %1435 = dma.done %s1431, 256
        $region104: #{tpu_custom_call.1} parent=99 // pred_fallthru
          _
      $region100: #{tpu_custom_call.1} parent=5 // pred_fallthru
        _
    $region6: #{tpu_custom_call.1} parent=1 // loop_footer
      %s30 = sadd.s32 1, %s26
    $region7: #{tpu_custom_call.1} parent=1 // loop_footer_branch
      %25 = sbr.rel target = $region3
    $region8: #{tpu_custom_call.1} parent=1 // loop_exit
      _
    %1436 = vsyncpa [#allocation3], 1
    %s1437 = scalar_lea.sflag [#allocation3], 1
    %1438 = vsyncpa %s1437, 1
    %1439 = vsyncpa [#allocation6], 1
    %1440 = vsyncpa [#allocation9], 1
    %1441 = vsyncpa [#allocation4], 1
    %s1442 = scalar_lea.sflag [#allocation4], 1
    %1443 = vsyncpa %s1442, 1

</llo_original>
